<compile_context>
chip_gen: v7x
topology: tpu7x:2x2x1
jax: 0.10.0
libtpu: 0.0.40
codegen_flags: <defaults>
</compile_context>

<pallas_src>
import numpy as np
import jax
import jax.numpy as jnp
from jax import lax
from jax.experimental import pallas as pl
from jax.experimental.pallas import tpu as pltpu


# ----------------------------------------------------------------------------
# Parameter / buffer generation (mirrors render_spherical.gen_grid exactly)
# ----------------------------------------------------------------------------
def gen_grid(sph_res, z_res):
    res = sph_res
    pi = np.pi
    phi = np.linspace(0, 180, res * 2 + 1)[1::2]
    theta = np.linspace(0, 360, res + 1)[:-1]
    grid = np.zeros([res, res, 3])
    for idp, p in enumerate(phi):
        for idt, t in enumerate(theta):
            grid[idp, idt, 2] = np.cos(p * pi / 180)
            proj = np.sin(p * pi / 180)
            grid[idp, idt, 0] = proj * np.cos(t * pi / 180)
            grid[idp, idt, 1] = proj * np.sin(t * pi / 180)
    grid = np.reshape(grid * 2, (res, res, 3))
    alpha = np.zeros([1, 1, z_res, 1])
    alpha[0, 0, :, 0] = np.linspace(0, 1, z_res)
    grid = grid[:, :, np.newaxis, :]
    grid = grid * (1 - alpha)                 # (res, res, z_res, 3)
    depth_weight = np.linspace(0, 1, z_res)
    return (jnp.asarray(grid, dtype=jnp.float32),
            jnp.asarray(depth_weight, dtype=jnp.float32))


# ----------------------------------------------------------------------------
# 5-D grid_sample (trilinear, zeros padding, align_corners convention of the
# original GenRe-era PyTorch).  Data-dependent gather: stays in plain JAX.
# ----------------------------------------------------------------------------
def grid_sample_3d(vox, grid):
    # vox: (B, C, D, H, W);  grid: (B, Do, Ho, Wo, 3), grid[...,0]=x(W),
    # grid[...,1]=y(H), grid[...,2]=z(D).  Returns (B, C, Do, Ho, Wo).
    B, C, D, H, W = vox.shape
    Do, Ho, Wo = grid.shape[1:4]
    gx, gy, gz = grid[..., 0], grid[..., 1], grid[..., 2]
    x = (gx + 1.0) * 0.5 * (W - 1)
    y = (gy + 1.0) * 0.5 * (H - 1)
    z = (gz + 1.0) * 0.5 * (D - 1)
    x0 = jnp.floor(x)
    y0 = jnp.floor(y)
    z0 = jnp.floor(z)
    fx, fy, fz = x - x0, y - y0, z - z0
    vox_flat = vox.reshape(B, C, D * H * W)
    out = jnp.zeros((B, C, Do, Ho, Wo), dtype=vox.dtype)
    for dz in (0, 1):
        for dy in (0, 1):
            for dx in (0, 1):
                xi, yi, zi = x0 + dx, y0 + dy, z0 + dz
                wx = fx if dx else (1.0 - fx)
                wy = fy if dy else (1.0 - fy)
                wz = fz if dz else (1.0 - fz)
                w = wx * wy * wz
                inb = ((xi >= 0) & (xi <= W - 1) &
                       (yi >= 0) & (yi <= H - 1) &
                       (zi >= 0) & (zi <= D - 1))
                xic = jnp.clip(xi, 0, W - 1).astype(jnp.int32)
                yic = jnp.clip(yi, 0, H - 1).astype(jnp.int32)
                zic = jnp.clip(zi, 0, D - 1).astype(jnp.int32)
                flat = ((zic * H + yic) * W + xic).reshape(B, 1, -1)
                vals = jnp.take_along_axis(
                    vox_flat,
                    jnp.broadcast_to(flat, (B, C, flat.shape[-1])),
                    axis=2).reshape(B, C, Do, Ho, Wo)
                wmask = (w * inb.astype(vox.dtype)).reshape(B, 1, Do, Ho, Wo)
                out = out + vals * wmask
    return out


# ----------------------------------------------------------------------------
# Pallas kernel.
#   tri_ref : (L, L)   block-diagonal strict-upper ones (L = pack*Z, resident)
#   cw_ref  : (1, L)   tiled linspace(0,1,Z) with seg-last lanes zeroed
#   cm_ref  : (1, L)   1.0 at the last lane of each Z-segment
#   seg_ref : (P8, L)  segment selector (rows >= pack are zero padding)
#   p_ref   : (tm, L)  packed ray probabilities (pack rays per row)
#   o_ref   : (P8, tm) transposed per-ray results: o[s, r] = ray r*pack+s
# ----------------------------------------------------------------------------
def _render_rays_kernel(tri_ref, cw_ref, cm_ref, seg_ref, p_ref, o_ref):
    p = jnp.clip(p_ref[...], 1e-5, 1.0 - 1e-5)              # (tm, L)
    logq = jnp.log(1.0 - p)                                  # log(1-p)
    # exclusive within-segment prefix sum of log(1-p):  logq @ T
    excl = lax.dot_general(
        logq, tri_ref[...], (((1,), (0,)), ((), ())),
        precision=lax.Precision.HIGHEST,
        preferred_element_type=jnp.float32)
    survive = jnp.exp(excl)                                  # prod_{j<k} (1-p_j)
    # per-lane contribution: non-last lanes -> survive*p*w (depth term);
    # seg-last lane -> survive*(p*w_last + (1-p)) == survive (w_last == 1),
    # which folds the background-prob term without an extra exp.
    comb = survive * (p * cw_ref[...] + cm_ref[...])         # (tm, L)
    # segment reduction, transposed so the output block is lane-dense:
    #   o[s, r] = sum_{k in segment s} comb[r, k]
    o_ref[...] = lax.dot_general(
        seg_ref[...], comb, (((1,), (1,)), ((), ())),
        precision=lax.Precision.HIGHEST,
        preferred_element_type=jnp.float32)


def render_rays(prob_sph, target_block_bytes=1 << 20):
    B, C, R1, R2, Z = prob_sph.shape
    M = B * C * R1 * R2

    # Ray packing: pack 128//Z rays per 128-lane row when Z divides 128.
    pack = 1
    if Z < 128 and 128 % Z == 0 and M % (128 // Z) == 0:
        pack = 128 // Z
    L = pack * Z
    Mr = M // pack
    P8 = max(8, -(-pack // 8) * 8)            # pad selector rows to sublane tile

    p2 = prob_sph.astype(jnp.float32).reshape(Mr, L)   # free row-major reshape

    # Resident constants (constant block index -> DMA'd once across the grid).
    tri = np.zeros((L, L), np.float32)
    tri_z = np.triu(np.ones((Z, Z), np.float32), k=1)
    for s in range(pack):
        tri[s * Z:(s + 1) * Z, s * Z:(s + 1) * Z] = tri_z
    w = np.tile(np.linspace(0.0, 1.0, Z, dtype=np.float32), pack)
    cm = np.zeros((L,), np.float32)
    cm[Z - 1::Z] = 1.0
    cw = w * (1.0 - cm)
    seg = np.zeros((P8, L), np.float32)
    for s in range(pack):
        seg[s, s * Z:(s + 1) * Z] = 1.0

    # Tile choice: ~1 MiB of ray data per grid step, tm a multiple of 128
    # (lane-aligned transposed output blocks); keep >=4 grid steps when the
    # problem is big enough (megacore split + pipelining).  No input padding.
    target = max(128, (target_block_bytes // (L * 4)) // 128 * 128)
    if Mr <= target:
        tm = Mr
    elif Mr < 4 * target:
        tm = max(128, (Mr // 4) // 128 * 128)
    else:
        tm = target
    n_blocks = pl.cdiv(Mr, tm)

    out = pl.pallas_call(
        _render_rays_kernel,
        out_shape=jax.ShapeDtypeStruct((P8, Mr), jnp.float32),
        grid_spec=pltpu.PrefetchScalarGridSpec(
            num_scalar_prefetch=0,
            grid=(n_blocks,),
            in_specs=[
                pl.BlockSpec((L, L), lambda i: (0, 0)),      # tri (resident)
                pl.BlockSpec((1, L), lambda i: (0, 0)),      # depth weights
                pl.BlockSpec((1, L), lambda i: (0, 0)),      # seg-last mask
                pl.BlockSpec((P8, L), lambda i: (0, 0)),     # segment selector
                pl.BlockSpec((tm, L), lambda i: (i, 0)),     # packed probs
            ],
            out_specs=pl.BlockSpec((P8, tm), lambda i: (0, i)),
        ),
        compiler_params=pltpu.CompilerParams(
            dimension_semantics=("parallel",),
            vmem_limit_bytes=32 * 1024 * 1024),
    )(jnp.asarray(tri), jnp.asarray(cw).reshape(1, L),
      jnp.asarray(cm).reshape(1, L), jnp.asarray(seg), p2)

    # out[s, r] is the result for flat ray index r*pack + s.
    return out[:pack, :].T.reshape(B, C, R1, R2)


# ----------------------------------------------------------------------------
# Full forward pass (render_spherical.forward)
# ----------------------------------------------------------------------------
def render_spherical_forward(vox, grid):
    B = vox.shape[0]
    vox_p = jnp.transpose(vox, (0, 1, 4, 3, 2))          # vox.permute(0,1,4,3,2)
    g = jnp.broadcast_to(grid[None], (B,) + grid.shape)  # grid.expand(B,...)
    prob_sph = grid_sample_3d(vox_p, g)                  # (B, C, R, R, Z)
    return render_rays(prob_sph)                         # (B, C, R, R)


# ----------------------------------------------------------------------------
# Pure-JAX reference of the ray-marching part (direct cumprod) for checking.
# ----------------------------------------------------------------------------
def _ref_rays(prob_sph):
    Z = prob_sph.shape[-1]
    p = jnp.clip(prob_sph, 1e-5, 1.0 - 1e-5)
    q = 1.0 - p
    cp = jnp.cumprod(q, axis=-1)
    excl = jnp.concatenate([jnp.ones_like(cp[..., :1]), cp[..., :-1]], axis=-1)
    stop = p * excl
    w = jnp.linspace(0.0, 1.0, Z)
    exp_depth = jnp.sum(stop * w, axis=-1)
    bg = jnp.prod(q, axis=-1)
    return exp_depth + bg


if __name__ == "__main__":
    # Small shapes consistent with the module (default 128/256 is too big for a
    # smoke test): spherical res 16, z res 32, voxel cube 16^3.
    sph_res, z_res = 16, 32
    B, C, S = 2, 1, 16

    key = jax.random.PRNGKey(0)
    vox = jax.random.uniform(key, (B, C, S, S, S), dtype=jnp.float32)

    grid, _ = gen_grid(sph_res, z_res)

    out = render_spherical_forward(vox, grid)
    out = jax.block_until_ready(out)
    assert out.shape == (B, C, sph_res, sph_res), out.shape
    assert out.dtype == jnp.float32

    # correctness check of the Pallas ray kernel vs a direct-cumprod reference
    vox_p = jnp.transpose(vox, (0, 1, 4, 3, 2))
    g = jnp.broadcast_to(grid[None], (B,) + grid.shape)
    prob_sph = grid_sample_3d(vox_p, g)
    ref = _ref_rays(prob_sph)
    err = float(jnp.max(jnp.abs(out - ref)))
    assert err < 1e-4, f"max abs err {err}"

    # TODO(synk): grid_sample_3d (data-dependent trilinear gather) stays in
    # plain JAX; a Pallas version would need manual DMA gather over voxel pages.

    print("KERNEL_OK")
</pallas_src>

<mosaic_0001>
module attributes {stable_mosaic.version = 11 : i64} {
  func.func @_render_rays_kernel(%arg0: i32, %arg1: memref<128x128xf32, #tpu.memory_space<vmem>>, %arg2: memref<1x128xf32, #tpu.memory_space<vmem>>, %arg3: memref<1x128xf32, #tpu.memory_space<vmem>>, %arg4: memref<8x128xf32, #tpu.memory_space<vmem>>, %arg5: memref<128x128xf32, #tpu.memory_space<vmem>>, %arg6: memref<8x128xf32, #tpu.memory_space<vmem>>) attributes {dimension_semantics = [#tpu.dimension_semantics<parallel>], iteration_bounds = array<i64: 1>, scalar_prefetch = 0 : i64, scratch_operands = 0 : i64, tpu.core_type = #tpu.core_type<tc>, window_params = [{pipeline_mode = #tpu.pipeline_mode<synchronous>, transform_indices = @transform_0, window_bounds = array<i64: 128, 128>}, {pipeline_mode = #tpu.pipeline_mode<synchronous>, transform_indices = @transform_1, window_bounds = array<i64: 1, 128>}, {pipeline_mode = #tpu.pipeline_mode<synchronous>, transform_indices = @transform_2, window_bounds = array<i64: 1, 128>}, {pipeline_mode = #tpu.pipeline_mode<synchronous>, transform_indices = @transform_3, window_bounds = array<i64: 8, 128>}, {transform_indices = @transform_4, window_bounds = array<i64: 128, 128>}, {transform_indices = @transform_5, window_bounds = array<i64: 8, 128>}]} {
    %c0 = arith.constant 0 : index
    %c0_0 = arith.constant 0 : index
    %0 = vector.load %arg5[%c0, %c0_0] : memref<128x128xf32, #tpu.memory_space<vmem>>, vector<128x128xf32>
    %cst = arith.constant 9.99999974E-6 : f32
    %cst_1 = arith.constant 0.999989986 : f32
    %1 = vector.broadcast %cst : f32 to vector<128x128xf32>
    %2 = arith.maximumf %1, %0 : vector<128x128xf32>
    %3 = vector.broadcast %cst_1 : f32 to vector<128x128xf32>
    %4 = arith.minimumf %3, %2 : vector<128x128xf32>
    %cst_2 = arith.constant 1.000000e+00 : f32
    %5 = vector.broadcast %cst_2 : f32 to vector<128x128xf32>
    %6 = arith.subf %5, %4 : vector<128x128xf32>
    %7 = math.log %6 : vector<128x128xf32>
    %c0_3 = arith.constant 0 : index
    %c0_4 = arith.constant 0 : index
    %8 = vector.load %arg1[%c0_3, %c0_4] : memref<128x128xf32, #tpu.memory_space<vmem>>, vector<128x128xf32>
    %cst_5 = arith.constant dense<0.000000e+00> : vector<128x128xf32>
    %9 = tpu.matmul %7, %8, %cst_5 {dimension_numbers = #tpu.dot_dimension_numbers<[1], [0], [0], [1], [0, 0, 1, 1], [], []>, precision = #tpu.contract_precision<fp32>} : vector<128x128xf32>, vector<128x128xf32>, vector<128x128xf32> -> vector<128x128xf32>
    %10 = math.exp %9 : vector<128x128xf32>
    %c0_6 = arith.constant 0 : index
    %c0_7 = arith.constant 0 : index
    %11 = vector.load %arg2[%c0_6, %c0_7] : memref<1x128xf32, #tpu.memory_space<vmem>>, vector<1x128xf32>
    %12 = vector.broadcast %11 : vector<1x128xf32> to vector<128x128xf32>
    %13 = arith.mulf %4, %12 : vector<128x128xf32>
    %c0_8 = arith.constant 0 : index
    %c0_9 = arith.constant 0 : index
    %14 = vector.load %arg3[%c0_8, %c0_9] : memref<1x128xf32, #tpu.memory_space<vmem>>, vector<1x128xf32>
    %15 = vector.broadcast %14 : vector<1x128xf32> to vector<128x128xf32>
    %16 = arith.addf %13, %15 : vector<128x128xf32>
    %17 = arith.mulf %10, %16 : vector<128x128xf32>
    %c0_10 = arith.constant 0 : index
    %c0_11 = arith.constant 0 : index
    %18 = vector.load %arg4[%c0_10, %c0_11] : memref<8x128xf32, #tpu.memory_space<vmem>>, vector<8x128xf32>
    %cst_12 = arith.constant dense<0.000000e+00> : vector<8x128xf32>
    %19 = tpu.matmul %18, %17, %cst_12 {dimension_numbers = #tpu.dot_dimension_numbers<[1], [1], [0], [0], [0, 0, 1, 0], [], []>, precision = #tpu.contract_precision<fp32>} : vector<8x128xf32>, vector<128x128xf32>, vector<8x128xf32> -> vector<8x128xf32>
    %c0_13 = arith.constant 0 : index
    %c0_14 = arith.constant 0 : index
    %20 = vector.load %arg6[%c0_13, %c0_14] : memref<8x128xf32, #tpu.memory_space<vmem>>, vector<8x128xf32>
    tpu.vector_store %arg6[%c0_13, %c0_14], %19 {strides = array<i32>} : memref<8x128xf32, #tpu.memory_space<vmem>>, vector<8x128xf32>,
    return
  }
  func.func @transform_0(%arg0: i32) -> (i32, i32) {
    %c0_i32 = arith.constant 0 : i32
    %c0_i32_0 = arith.constant 0 : i32
    %c0_i32_1 = arith.constant 0 : i32
    return %c0_i32, %c0_i32_0 : i32, i32
  }
  func.func @transform_1(%arg0: i32) -> (i32, i32) {
    %c0_i32 = arith.constant 0 : i32
    %c0_i32_0 = arith.constant 0 : i32
    %c0_i32_1 = arith.constant 0 : i32
    return %c0_i32, %c0_i32_0 : i32, i32
  }
  func.func @transform_2(%arg0: i32) -> (i32, i32) {
    %c0_i32 = arith.constant 0 : i32
    %c0_i32_0 = arith.constant 0 : i32
    %c0_i32_1 = arith.constant 0 : i32
    return %c0_i32, %c0_i32_0 : i32, i32
  }
  func.func @transform_3(%arg0: i32) -> (i32, i32) {
    %c0_i32 = arith.constant 0 : i32
    %c0_i32_0 = arith.constant 0 : i32
    %c0_i32_1 = arith.constant 0 : i32
    return %c0_i32, %c0_i32_0 : i32, i32
  }
  func.func @transform_4(%arg0: i32) -> (i32, i32) {
    %c0_i32 = arith.constant 0 : i32
    %c0_i32_0 = arith.constant 0 : i32
    return %arg0, %c0_i32 : i32, i32
  }
  func.func @transform_5(%arg0: i32) -> (i32, i32) {
    %c0_i32 = arith.constant 0 : i32
    %c0_i32_0 = arith.constant 0 : i32
    return %c0_i32, %arg0 : i32, i32
  }
}

</mosaic_0001>

<llo_original>
// kernel: tpu_custom_call.1
$region0: #{tpu_custom_call.1}
  #allocation0 [shape = 'u32[]', space=smem, size = 0x4, offset = 0x4, fixed_abs, tag = 'smem constant byte address 0x4 - core index']
  #allocation1 [shape = 'u32[144,128]{1,0:T(1,128)}', space=vmem, size = 0x12000, scoped, tag = 'internal scratch']
  %s0 = inlined_call_operand.hbm [shape: f32[128,128], index: 0, kind: input, shape index: {}]
  %s1 = inlined_call_operand.vmem [shape: f32[1,128], index: 1, kind: input, shape index: {}]
  %s2 = inlined_call_operand.vmem [shape: f32[1,128], index: 2, kind: input, shape index: {}]
  %s3 = inlined_call_operand.vmem [shape: f32[8,128], index: 3, kind: input, shape index: {}]
  %s4 = inlined_call_operand.hbm [shape: f32[128,128], index: 4, kind: input, shape index: {}]
  %s5 = inlined_call_operand.hbm [shape: f32[8,128], index: 5, kind: output, shape index: {}]
  %s6 = sld [smem:[#allocation0]]
  $region38: #{tpu_custom_call.1} parent=0
    _
  %s8 = ssub.s32 1, %s6
  %s9 = scalar_select 0, %s8, %s6
  $region1: #{tpu_custom_call.1} parent=0
    #allocation2 [shape = 'u8[65536]{0}', space=vmem, size = 0x10000, scoped, tag = 'input window, operand 0, single buffered']
    #allocation3 [shape = 's32[1]{0}', space=sflag, size = 0x4, scoped, tag = 'scoped memory for tpu_custom_call.1']
    #allocation4 [shape = 's32[1]{0}', space=sflag, size = 0x4, scoped, tag = 'scoped memory for tpu_custom_call.1']
    #allocation5 [shape = 'u8[65536]{0}', space=vmem, size = 0x10000, scoped, tag = 'input window, operand 4, single buffered']
    #allocation6 [shape = 's32[1]{0}', space=sflag, size = 0x4, scoped, tag = 'scoped memory for tpu_custom_call.1']
    #allocation7 [shape = 'u8[4096]{0}', space=vmem, size = 0x1000, scoped, tag = 'output window, operand 0, single buffered']
    %10 = vsyncpa [#allocation3], 0
    %11 = vsyncpa [#allocation6], 0
    %12 = vsyncpa [#allocation4], 0
    // Predicated region
    $region2: #{tpu_custom_call.1} parent=1 // pred_check
      _
    $region3: #{tpu_custom_call.1} parent=1 // pred_check_branch
      %14 = sbr.rel (0) target = $region5
    $region4: #{tpu_custom_call.1} parent=1 // pred_region
      %s16 = ssub.s32 2048, 2048
      %17 = vsyncadd [#allocation3], %s16
      %s18 = sshll.u32 [#allocation2], 4
      %s19 = int_to_ptr.vmem [resolvable:$true] %s18
      %24 = dma.hbm_to_vmem [thread:$0]  %s0, 2048, %s19, [#allocation3], 128, 128, 8
    $region5: #{tpu_custom_call.1} parent=1 // pred_fallthru
      _
    // Predicated region
    $region6: #{tpu_custom_call.1} parent=1 // pred_check
      _
    $region7: #{tpu_custom_call.1} parent=1 // pred_check_branch
      %26 = sbr.rel (0) target = $region9
    $region8: #{tpu_custom_call.1} parent=1 // pred_region
      _
    $region9: #{tpu_custom_call.1} parent=1 // pred_fallthru
      _
    // Predicated region
    $region10: #{tpu_custom_call.1} parent=1 // pred_check
      _
    $region11: #{tpu_custom_call.1} parent=1 // pred_check_branch
      %28 = sbr.rel (0) target = $region13
    $region12: #{tpu_custom_call.1} parent=1 // pred_region
      _
    $region13: #{tpu_custom_call.1} parent=1 // pred_fallthru
      _
    // Predicated region
    $region14: #{tpu_custom_call.1} parent=1 // pred_check
      _
    $region15: #{tpu_custom_call.1} parent=1 // pred_check_branch
      %30 = sbr.rel (0) target = $region17
    $region16: #{tpu_custom_call.1} parent=1 // pred_region
      _
    $region17: #{tpu_custom_call.1} parent=1 // pred_fallthru
      _
    // Predicated region
    $region18: #{tpu_custom_call.1} parent=1 // pred_check
      _
    $region19: #{tpu_custom_call.1} parent=1 // pred_check_branch
      %32 = sbr.rel (0) target = $region21
    $region20: #{tpu_custom_call.1} parent=1 // pred_region
      %s34 = ssub.s32 2048, 2048
      %35 = vsyncadd [#allocation6], %s34
      %s36 = sshll.u32 [#allocation5], 4
      %s37 = int_to_ptr.vmem [resolvable:$true] %s36
      %42 = dma.hbm_to_vmem [thread:$0]  %s4, 2048, %s37, [#allocation6], 128, 128, 8
    $region21: #{tpu_custom_call.1} parent=1 // pred_fallthru
      _
    // Predicated region
    $region22: #{tpu_custom_call.1} parent=1 // pred_check
      _
    $region23: #{tpu_custom_call.1} parent=1 // pred_check_branch
      %44 = sbr.rel (0) target = $region25
    $region24: #{tpu_custom_call.1} parent=1 // pred_region
      %45 = dma.done [#allocation3], 2048
    $region25: #{tpu_custom_call.1} parent=1 // pred_fallthru
      _
    // Predicated region
    $region26: #{tpu_custom_call.1} parent=1 // pred_check
      _
    $region27: #{tpu_custom_call.1} parent=1 // pred_check_branch
      %47 = sbr.rel (0) target = $region29
    $region28: #{tpu_custom_call.1} parent=1 // pred_region
      %48 = dma.done [#allocation6], 2048
    $region29: #{tpu_custom_call.1} parent=1 // pred_fallthru
      _
    %v49 = vld [vmem:[#allocation5] sm:$0xff]
    %v50 = vld [vmem:[#allocation5 + $0x8] sm:$0xff]
    %v51 = vld [vmem:[#allocation5 + $0x10] sm:$0xff]
    %v52 = vld [vmem:[#allocation5 + $0x18] sm:$0xff]
    %v53 = vld [vmem:[#allocation5 + $0x20] sm:$0xff]
    %v54 = vld [vmem:[#allocation5 + $0x28] sm:$0xff]
    %v55 = vld [vmem:[#allocation5 + $0x30] sm:$0xff]
    %v56 = vld [vmem:[#allocation5 + $0x38] sm:$0xff]
    %v57 = vld [vmem:[#allocation5 + $0x40] sm:$0xff]
    %v58 = vld [vmem:[#allocation5 + $0x48] sm:$0xff]
    %v59 = vld [vmem:[#allocation5 + $0x50] sm:$0xff]
    %v60 = vld [vmem:[#allocation5 + $0x58] sm:$0xff]
    %v61 = vld [vmem:[#allocation5 + $0x60] sm:$0xff]
    %v62 = vld [vmem:[#allocation5 + $0x68] sm:$0xff]
    %v63 = vld [vmem:[#allocation5 + $0x70] sm:$0xff]
    %v64 = vld [vmem:[#allocation5 + $0x78] sm:$0xff]
    %v65 = vmax.f32 %v49, 1e-05
    %v66 = vmax.f32 %v50, 1e-05
    %v67 = vmax.f32 %v51, 1e-05
    %v68 = vmax.f32 %v52, 1e-05
    %v69 = vmax.f32 %v53, 1e-05
    %v70 = vmax.f32 %v54, 1e-05
    %v71 = vmax.f32 %v55, 1e-05
    %v72 = vmax.f32 %v56, 1e-05
    %v73 = vmax.f32 %v57, 1e-05
    %v74 = vmax.f32 %v58, 1e-05
    %v75 = vmax.f32 %v59, 1e-05
    %v76 = vmax.f32 %v60, 1e-05
    %v77 = vmax.f32 %v61, 1e-05
    %v78 = vmax.f32 %v62, 1e-05
    %v79 = vmax.f32 %v63, 1e-05
    %v80 = vmax.f32 %v64, 1e-05
    %v81 = vmin.f32 %v65, 0.99999
    %v82 = vmin.f32 %v66, 0.99999
    %v83 = vmin.f32 %v67, 0.99999
    %v84 = vmin.f32 %v68, 0.99999
    %v85 = vmin.f32 %v69, 0.99999
    %v86 = vmin.f32 %v70, 0.99999
    %v87 = vmin.f32 %v71, 0.99999
    %v88 = vmin.f32 %v72, 0.99999
    %v89 = vmin.f32 %v73, 0.99999
    %v90 = vmin.f32 %v74, 0.99999
    %v91 = vmin.f32 %v75, 0.99999
    %v92 = vmin.f32 %v76, 0.99999
    %v93 = vmin.f32 %v77, 0.99999
    %v94 = vmin.f32 %v78, 0.99999
    %v95 = vmin.f32 %v79, 0.99999
    %v96 = vmin.f32 %v80, 0.99999
    %v97 = vsub.f32 1.0, %v81
    %v98 = vsub.f32 1.0, %v82
    %v99 = vsub.f32 1.0, %v83
    %v100 = vsub.f32 1.0, %v84
    %v101 = vsub.f32 1.0, %v85
    %v102 = vsub.f32 1.0, %v86
    %v103 = vsub.f32 1.0, %v87
    %v104 = vsub.f32 1.0, %v88
    %v105 = vsub.f32 1.0, %v89
    %v106 = vsub.f32 1.0, %v90
    %v107 = vsub.f32 1.0, %v91
    %v108 = vsub.f32 1.0, %v92
    %v109 = vsub.f32 1.0, %v93
    %v110 = vsub.f32 1.0, %v94
    %v111 = vsub.f32 1.0, %v95
    %v112 = vsub.f32 1.0, %v96
    %v113 = vlog2.pop %v97
    %v114 = vmul.f32 %v113, 0.6931472
    %v115 = vlog2.pop %v98
    %v116 = vmul.f32 %v115, 0.6931472
    %v117 = vlog2.pop %v99
    %v118 = vmul.f32 %v117, 0.6931472
    %v119 = vlog2.pop %v100
    %v120 = vmul.f32 %v119, 0.6931472
    %v121 = vlog2.pop %v101
    %v122 = vmul.f32 %v121, 0.6931472
    %v123 = vlog2.pop %v102
    %v124 = vmul.f32 %v123, 0.6931472
    %v125 = vlog2.pop %v103
    %v126 = vmul.f32 %v125, 0.6931472
    %v127 = vlog2.pop %v104
    %v128 = vmul.f32 %v127, 0.6931472
    %v129 = vlog2.pop %v105
    %v130 = vmul.f32 %v129, 0.6931472
    %v131 = vlog2.pop %v106
    %v132 = vmul.f32 %v131, 0.6931472
    %v133 = vlog2.pop %v107
    %v134 = vmul.f32 %v133, 0.6931472
    %v135 = vlog2.pop %v108
    %v136 = vmul.f32 %v135, 0.6931472
    %v137 = vlog2.pop %v109
    %v138 = vmul.f32 %v137, 0.6931472
    %v139 = vlog2.pop %v110
    %v140 = vmul.f32 %v139, 0.6931472
    %v141 = vlog2.pop %v111
    %v142 = vmul.f32 %v141, 0.6931472
    %v143 = vlog2.pop %v112
    %v144 = vmul.f32 %v143, 0.6931472
    %v145 = vld [vmem:[#allocation2] sm:$0xff]
    %v146 = vld [vmem:[#allocation2 + $0x8] sm:$0xff]
    %v147 = vld [vmem:[#allocation2 + $0x10] sm:$0xff]
    %v148 = vld [vmem:[#allocation2 + $0x18] sm:$0xff]
    %v149 = vld [vmem:[#allocation2 + $0x20] sm:$0xff]
    %v150 = vld [vmem:[#allocation2 + $0x28] sm:$0xff]
    %v151 = vld [vmem:[#allocation2 + $0x30] sm:$0xff]
    %v152 = vld [vmem:[#allocation2 + $0x38] sm:$0xff]
    %v153 = vld [vmem:[#allocation2 + $0x40] sm:$0xff]
    %v154 = vld [vmem:[#allocation2 + $0x48] sm:$0xff]
    %v155 = vld [vmem:[#allocation2 + $0x50] sm:$0xff]
    %v156 = vld [vmem:[#allocation2 + $0x58] sm:$0xff]
    %v157 = vld [vmem:[#allocation2 + $0x60] sm:$0xff]
    %v158 = vld [vmem:[#allocation2 + $0x68] sm:$0xff]
    %v159 = vld [vmem:[#allocation2 + $0x70] sm:$0xff]
    %v160 = vld [vmem:[#allocation2 + $0x78] sm:$0xff]
    %161 = vmatprep.subr.mxu0 0.0
    %v162 = vand.u32 %v145, 4294901760
    %163 = vmatpush1.msra.mxu0 %v162
    %164 = vmatprep.subr.mxu0 0.0
    %v165 = vand.u32 %v146, 4294901760
    %166 = vmatpush1.msra.mxu0 %v165
    %167 = vmatprep.subr.mxu0 0.0
    %v168 = vand.u32 %v147, 4294901760
    %169 = vmatpush1.msra.mxu0 %v168
    %170 = vmatprep.subr.mxu0 0.0
    %v171 = vand.u32 %v148, 4294901760
    %172 = vmatpush1.msra.mxu0 %v171
    %173 = vmatprep.subr.mxu0 0.0
    %v174 = vand.u32 %v149, 4294901760
    %175 = vmatpush1.msra.mxu0 %v174
    %176 = vmatprep.subr.mxu0 0.0
    %v177 = vand.u32 %v150, 4294901760
    %178 = vmatpush1.msra.mxu0 %v177
    %179 = vmatprep.subr.mxu0 0.0
    %v180 = vand.u32 %v151, 4294901760
    %181 = vmatpush1.msra.mxu0 %v180
    %182 = vmatprep.subr.mxu0 0.0
    %v183 = vand.u32 %v152, 4294901760
    %184 = vmatpush1.msra.mxu0 %v183
    %185 = vmatprep.subr.mxu0 0.0
    %v186 = vand.u32 %v153, 4294901760
    %187 = vmatpush1.msra.mxu0 %v186
    %188 = vmatprep.subr.mxu0 0.0
    %v189 = vand.u32 %v154, 4294901760
    %190 = vmatpush1.msra.mxu0 %v189
    %191 = vmatprep.subr.mxu0 0.0
    %v192 = vand.u32 %v155, 4294901760
    %193 = vmatpush1.msra.mxu0 %v192
    %194 = vmatprep.subr.mxu0 0.0
    %v195 = vand.u32 %v156, 4294901760
    %196 = vmatpush1.msra.mxu0 %v195
    %197 = vmatprep.subr.mxu0 0.0
    %v198 = vand.u32 %v157, 4294901760
    %199 = vmatpush1.msra.mxu0 %v198
    %200 = vmatprep.subr.mxu0 0.0
    %v201 = vand.u32 %v158, 4294901760
    %202 = vmatpush1.msra.mxu0 %v201
    %203 = vmatprep.subr.mxu0 0.0
    %v204 = vand.u32 %v159, 4294901760
    %205 = vmatpush1.msra.mxu0 %v204
    %206 = vmatprep.subr.mxu0 0.0
    %v207 = vand.u32 %v160, 4294901760
    %208 = vmatpush1.msra.mxu0 %v207
    %209 = vmatprep.subr.mxu0 0.0
    %210 = vmatpush1.msra.mxu0 0.0
    %211 = vmatprep.subr.mxu0 0.0
    %212 = vmatpush1.msra.mxu0 0.0
    %213 = vmatprep.subr.mxu0 0.0
    %214 = vmatpush1.msra.mxu0 0.0
    %215 = vmatprep.subr.mxu0 0.0
    %216 = vmatpush1.msra.mxu0 0.0
    %217 = vmatprep.subr.mxu0 0.0
    %218 = vmatpush1.msra.mxu0 0.0
    %219 = vmatprep.subr.mxu0 0.0
    %220 = vmatpush1.msra.mxu0 0.0
    %221 = vmatprep.subr.mxu0 0.0
    %222 = vmatpush1.msra.mxu0 0.0
    %223 = vmatprep.subr.mxu0 0.0
    %224 = vmatpush1.msra.mxu0 0.0
    %225 = vmatprep.subr.mxu0 0.0
    %226 = vmatpush1.msra.mxu0 0.0
    %227 = vmatprep.subr.mxu0 0.0
    %228 = vmatpush1.msra.mxu0 0.0
    %229 = vmatprep.subr.mxu0 0.0
    %230 = vmatpush1.msra.mxu0 0.0
    %231 = vmatprep.subr.mxu0 0.0
    %232 = vmatpush1.msra.mxu0 0.0
    %233 = vmatprep.subr.mxu0 0.0
    %234 = vmatpush1.msra.mxu0 0.0
    %235 = vmatprep.subr.mxu0 0.0
    %236 = vmatpush1.msra.mxu0 0.0
    %237 = vmatprep.subr.mxu0 0.0
    %238 = vmatpush1.msra.mxu0 0.0
    %239 = vmatprep.subr.mxu0 0.0
    %240 = vmatpush1.msra.mxu0 0.0
    %241 = vmatprep.mubr.f32.mxu0 0.0
    %v242 = vand.u32 %v114, 4294901760
    %v243 = vsub.f32 %v114, %v242
    %v244 = vand.u32 %v243, 4294901760
    %v245 = vsub.f32 %v243, %v244
    %v246 = vand.u32 %v245, 4294901760
    %247 = vmatmul.mubr.f32.gmra.mrb[0].mxu0 %v246
    %v248 = vpop.f32.mrb[0].mxu0
    %v249 = vadd.f32 0.0, %v248
    %v250 = vpop.f32.mrb[0].mxu0
    %251 = vmatprep.mubr.f32.mxu0 0.0
    %v252 = vand.u32 %v116, 4294901760
    %v253 = vsub.f32 %v116, %v252
    %v254 = vand.u32 %v253, 4294901760
    %v255 = vsub.f32 %v253, %v254
    %v256 = vand.u32 %v255, 4294901760
    %257 = vmatmul.mubr.f32.gmra.mrb[0].mxu0 %v256
    %v258 = vpop.f32.mrb[0].mxu0
    %v259 = vadd.f32 0.0, %v258
    %v260 = vpop.f32.mrb[0].mxu0
    %261 = vmatprep.mubr.f32.mxu0 0.0
    %v262 = vand.u32 %v118, 4294901760
    %v263 = vsub.f32 %v118, %v262
    %v264 = vand.u32 %v263, 4294901760
    %v265 = vsub.f32 %v263, %v264
    %v266 = vand.u32 %v265, 4294901760
    %267 = vmatmul.mubr.f32.gmra.mrb[0].mxu0 %v266
    %v268 = vpop.f32.mrb[0].mxu0
    %v269 = vadd.f32 0.0, %v268
    %v270 = vpop.f32.mrb[0].mxu0
    %271 = vmatprep.mubr.f32.mxu0 0.0
    %v272 = vand.u32 %v120, 4294901760
    %v273 = vsub.f32 %v120, %v272
    %v274 = vand.u32 %v273, 4294901760
    %v275 = vsub.f32 %v273, %v274
    %v276 = vand.u32 %v275, 4294901760
    %277 = vmatmul.mubr.f32.gmra.mrb[0].mxu0 %v276
    %v278 = vpop.f32.mrb[0].mxu0
    %v279 = vadd.f32 0.0, %v278
    %v280 = vpop.f32.mrb[0].mxu0
    %281 = vmatprep.mubr.f32.mxu0 0.0
    %v282 = vand.u32 %v122, 4294901760
    %v283 = vsub.f32 %v122, %v282
    %v284 = vand.u32 %v283, 4294901760
    %v285 = vsub.f32 %v283, %v284
    %v286 = vand.u32 %v285, 4294901760
    %287 = vmatmul.mubr.f32.gmra.mrb[0].mxu0 %v286
    %v288 = vpop.f32.mrb[0].mxu0
    %v289 = vadd.f32 0.0, %v288
    %v290 = vpop.f32.mrb[0].mxu0
    %291 = vmatprep.mubr.f32.mxu0 0.0
    %v292 = vand.u32 %v124, 4294901760
    %v293 = vsub.f32 %v124, %v292
    %v294 = vand.u32 %v293, 4294901760
    %v295 = vsub.f32 %v293, %v294
    %v296 = vand.u32 %v295, 4294901760
    %297 = vmatmul.mubr.f32.gmra.mrb[0].mxu0 %v296
    %v298 = vpop.f32.mrb[0].mxu0
    %v299 = vadd.f32 0.0, %v298
    %v300 = vpop.f32.mrb[0].mxu0
    %301 = vmatprep.mubr.f32.mxu0 0.0
    %v302 = vand.u32 %v126, 4294901760
    %v303 = vsub.f32 %v126, %v302
    %v304 = vand.u32 %v303, 4294901760
    %v305 = vsub.f32 %v303, %v304
    %v306 = vand.u32 %v305, 4294901760
    %307 = vmatmul.mubr.f32.gmra.mrb[0].mxu0 %v306
    %v308 = vpop.f32.mrb[0].mxu0
    %v309 = vadd.f32 0.0, %v308
    %v310 = vpop.f32.mrb[0].mxu0
    %311 = vmatprep.mubr.f32.mxu0 0.0
    %v312 = vand.u32 %v128, 4294901760
    %v313 = vsub.f32 %v128, %v312
    %v314 = vand.u32 %v313, 4294901760
    %v315 = vsub.f32 %v313, %v314
    %v316 = vand.u32 %v315, 4294901760
    %317 = vmatmul.mubr.f32.gmra.mrb[0].mxu0 %v316
    %v318 = vpop.f32.mrb[0].mxu0
    %v319 = vadd.f32 0.0, %v318
    %v320 = vpop.f32.mrb[0].mxu0
    %321 = vmatprep.mubr.f32.mxu0 0.0
    %v322 = vand.u32 %v130, 4294901760
    %v323 = vsub.f32 %v130, %v322
    %v324 = vand.u32 %v323, 4294901760
    %v325 = vsub.f32 %v323, %v324
    %v326 = vand.u32 %v325, 4294901760
    %327 = vmatmul.mubr.f32.gmra.mrb[0].mxu0 %v326
    %v328 = vpop.f32.mrb[0].mxu0
    %v329 = vadd.f32 0.0, %v328
    %v330 = vpop.f32.mrb[0].mxu0
    %331 = vmatprep.mubr.f32.mxu0 0.0
    %v332 = vand.u32 %v132, 4294901760
    %v333 = vsub.f32 %v132, %v332
    %v334 = vand.u32 %v333, 4294901760
    %v335 = vsub.f32 %v333, %v334
    %v336 = vand.u32 %v335, 4294901760
    %337 = vmatmul.mubr.f32.gmra.mrb[0].mxu0 %v336
    %v338 = vpop.f32.mrb[0].mxu0
    %v339 = vadd.f32 0.0, %v338
    %v340 = vpop.f32.mrb[0].mxu0
    %341 = vmatprep.mubr.f32.mxu0 0.0
    %v342 = vand.u32 %v134, 4294901760
    %v343 = vsub.f32 %v134, %v342
    %v344 = vand.u32 %v343, 4294901760
    %v345 = vsub.f32 %v343, %v344
    %v346 = vand.u32 %v345, 4294901760
    %347 = vmatmul.mubr.f32.gmra.mrb[0].mxu0 %v346
    %v348 = vpop.f32.mrb[0].mxu0
    %v349 = vadd.f32 0.0, %v348
    %v350 = vpop.f32.mrb[0].mxu0
    %351 = vmatprep.mubr.f32.mxu0 0.0
    %v352 = vand.u32 %v136, 4294901760
    %v353 = vsub.f32 %v136, %v352
    %v354 = vand.u32 %v353, 4294901760
    %v355 = vsub.f32 %v353, %v354
    %v356 = vand.u32 %v355, 4294901760
    %357 = vmatmul.mubr.f32.gmra.mrb[0].mxu0 %v356
    %v358 = vpop.f32.mrb[0].mxu0
    %v359 = vadd.f32 0.0, %v358
    %v360 = vpop.f32.mrb[0].mxu0
    %361 = vmatprep.mubr.f32.mxu0 0.0
    %v362 = vand.u32 %v138, 4294901760
    %v363 = vsub.f32 %v138, %v362
    %v364 = vand.u32 %v363, 4294901760
    %v365 = vsub.f32 %v363, %v364
    %v366 = vand.u32 %v365, 4294901760
    %367 = vmatmul.mubr.f32.gmra.mrb[0].mxu0 %v366
    %v368 = vpop.f32.mrb[0].mxu0
    %v369 = vadd.f32 0.0, %v368
    %v370 = vpop.f32.mrb[0].mxu0
    %371 = vmatprep.mubr.f32.mxu0 0.0
    %v372 = vand.u32 %v140, 4294901760
    %v373 = vsub.f32 %v140, %v372
    %v374 = vand.u32 %v373, 4294901760
    %v375 = vsub.f32 %v373, %v374
    %v376 = vand.u32 %v375, 4294901760
    %377 = vmatmul.mubr.f32.gmra.mrb[0].mxu0 %v376
    %v378 = vpop.f32.mrb[0].mxu0
    %v379 = vadd.f32 0.0, %v378
    %v380 = vpop.f32.mrb[0].mxu0
    %381 = vmatprep.mubr.f32.mxu0 0.0
    %v382 = vand.u32 %v142, 4294901760
    %v383 = vsub.f32 %v142, %v382
    %v384 = vand.u32 %v383, 4294901760
    %v385 = vsub.f32 %v383, %v384
    %v386 = vand.u32 %v385, 4294901760
    %387 = vmatmul.mubr.f32.gmra.mrb[0].mxu0 %v386
    %v388 = vpop.f32.mrb[0].mxu0
    %v389 = vadd.f32 0.0, %v388
    %v390 = vpop.f32.mrb[0].mxu0
    %391 = vmatprep.mubr.f32.mxu0 0.0
    %v392 = vand.u32 %v144, 4294901760
    %v393 = vsub.f32 %v144, %v392
    %v394 = vand.u32 %v393, 4294901760
    %v395 = vsub.f32 %v393, %v394
    %v396 = vand.u32 %v395, 4294901760
    %397 = vmatmul.mubr.f32.gmra.mrb[0].mxu0 %v396
    %v398 = vpop.f32.mrb[0].mxu0
    %v399 = vadd.f32 0.0, %v398
    %v400 = vpop.f32.mrb[0].mxu0
    %401 = vdwg.mxu0
    %402 = vmatprep.subr.mxu0 0.0
    %v403 = vand.u32 %v145, 4294901760
    %v404 = vsub.f32 %v145, %v403
    %v405 = vand.u32 %v404, 4294901760
    %v406 = vsub.f32 %v404, %v405
    %v407 = vand.u32 %v406, 4294901760
    %408 = vmatpush1.msra.mxu0 %v407
    %409 = vmatprep.subr.mxu0 0.0
    %v410 = vand.u32 %v146, 4294901760
    %v411 = vsub.f32 %v146, %v410
    %v412 = vand.u32 %v411, 4294901760
    %v413 = vsub.f32 %v411, %v412
    %v414 = vand.u32 %v413, 4294901760
    %415 = vmatpush1.msra.mxu0 %v414
    %416 = vmatprep.subr.mxu0 0.0
    %v417 = vand.u32 %v147, 4294901760
    %v418 = vsub.f32 %v147, %v417
    %v419 = vand.u32 %v418, 4294901760
    %v420 = vsub.f32 %v418, %v419
    %v421 = vand.u32 %v420, 4294901760
    %422 = vmatpush1.msra.mxu0 %v421
    %423 = vmatprep.subr.mxu0 0.0
    %v424 = vand.u32 %v148, 4294901760
    %v425 = vsub.f32 %v148, %v424
    %v426 = vand.u32 %v425, 4294901760
    %v427 = vsub.f32 %v425, %v426
    %v428 = vand.u32 %v427, 4294901760
    %429 = vmatpush1.msra.mxu0 %v428
    %430 = vmatprep.subr.mxu0 0.0
    %v431 = vand.u32 %v149, 4294901760
    %v432 = vsub.f32 %v149, %v431
    %v433 = vand.u32 %v432, 4294901760
    %v434 = vsub.f32 %v432, %v433
    %v435 = vand.u32 %v434, 4294901760
    %436 = vmatpush1.msra.mxu0 %v435
    %437 = vmatprep.subr.mxu0 0.0
    %v438 = vand.u32 %v150, 4294901760
    %v439 = vsub.f32 %v150, %v438
    %v440 = vand.u32 %v439, 4294901760
    %v441 = vsub.f32 %v439, %v440
    %v442 = vand.u32 %v441, 4294901760
    %443 = vmatpush1.msra.mxu0 %v442
    %444 = vmatprep.subr.mxu0 0.0
    %v445 = vand.u32 %v151, 4294901760
    %v446 = vsub.f32 %v151, %v445
    %v447 = vand.u32 %v446, 4294901760
    %v448 = vsub.f32 %v446, %v447
    %v449 = vand.u32 %v448, 4294901760
    %450 = vmatpush1.msra.mxu0 %v449
    %451 = vmatprep.subr.mxu0 0.0
    %v452 = vand.u32 %v152, 4294901760
    %v453 = vsub.f32 %v152, %v452
    %v454 = vand.u32 %v453, 4294901760
    %v455 = vsub.f32 %v453, %v454
    %v456 = vand.u32 %v455, 4294901760
    %457 = vmatpush1.msra.mxu0 %v456
    %458 = vmatprep.subr.mxu0 0.0
    %v459 = vand.u32 %v153, 4294901760
    %v460 = vsub.f32 %v153, %v459
    %v461 = vand.u32 %v460, 4294901760
    %v462 = vsub.f32 %v460, %v461
    %v463 = vand.u32 %v462, 4294901760
    %464 = vmatpush1.msra.mxu0 %v463
    %465 = vmatprep.subr.mxu0 0.0
    %v466 = vand.u32 %v154, 4294901760
    %v467 = vsub.f32 %v154, %v466
    %v468 = vand.u32 %v467, 4294901760
    %v469 = vsub.f32 %v467, %v468
    %v470 = vand.u32 %v469, 4294901760
    %471 = vmatpush1.msra.mxu0 %v470
    %472 = vmatprep.subr.mxu0 0.0
    %v473 = vand.u32 %v155, 4294901760
    %v474 = vsub.f32 %v155, %v473
    %v475 = vand.u32 %v474, 4294901760
    %v476 = vsub.f32 %v474, %v475
    %v477 = vand.u32 %v476, 4294901760
    %478 = vmatpush1.msra.mxu0 %v477
    %479 = vmatprep.subr.mxu0 0.0
    %v480 = vand.u32 %v156, 4294901760
    %v481 = vsub.f32 %v156, %v480
    %v482 = vand.u32 %v481, 4294901760
    %v483 = vsub.f32 %v481, %v482
    %v484 = vand.u32 %v483, 4294901760
    %485 = vmatpush1.msra.mxu0 %v484
    %486 = vmatprep.subr.mxu0 0.0
    %v487 = vand.u32 %v157, 4294901760
    %v488 = vsub.f32 %v157, %v487
    %v489 = vand.u32 %v488, 4294901760
    %v490 = vsub.f32 %v488, %v489
    %v491 = vand.u32 %v490, 4294901760
    %492 = vmatpush1.msra.mxu0 %v491
    %493 = vmatprep.subr.mxu0 0.0
    %v494 = vand.u32 %v158, 4294901760
    %v495 = vsub.f32 %v158, %v494
    %v496 = vand.u32 %v495, 4294901760
    %v497 = vsub.f32 %v495, %v496
    %v498 = vand.u32 %v497, 4294901760
    %499 = vmatpush1.msra.mxu0 %v498
    %500 = vmatprep.subr.mxu0 0.0
    %v501 = vand.u32 %v159, 4294901760
    %v502 = vsub.f32 %v159, %v501
    %v503 = vand.u32 %v502, 4294901760
    %v504 = vsub.f32 %v502, %v503
    %v505 = vand.u32 %v504, 4294901760
    %506 = vmatpush1.msra.mxu0 %v505
    %507 = vmatprep.subr.mxu0 0.0
    %v508 = vand.u32 %v160, 4294901760
    %v509 = vsub.f32 %v160, %v508
    %v510 = vand.u32 %v509, 4294901760
    %v511 = vsub.f32 %v509, %v510
    %v512 = vand.u32 %v511, 4294901760
    %513 = vmatpush1.msra.mxu0 %v512
    %514 = vmatprep.subr.mxu0 0.0
    %515 = vmatpush1.msra.mxu0 0.0
    %516 = vmatprep.subr.mxu0 0.0
    %517 = vmatpush1.msra.mxu0 0.0
    %518 = vmatprep.subr.mxu0 0.0
    %519 = vmatpush1.msra.mxu0 0.0
    %520 = vmatprep.subr.mxu0 0.0
    %521 = vmatpush1.msra.mxu0 0.0
    %522 = vmatprep.subr.mxu0 0.0
    %523 = vmatpush1.msra.mxu0 0.0
    %524 = vmatprep.subr.mxu0 0.0
    %525 = vmatpush1.msra.mxu0 0.0
    %526 = vmatprep.subr.mxu0 0.0
    %527 = vmatpush1.msra.mxu0 0.0
    %528 = vmatprep.subr.mxu0 0.0
    %529 = vmatpush1.msra.mxu0 0.0
    %530 = vmatprep.subr.mxu0 0.0
    %531 = vmatpush1.msra.mxu0 0.0
    %532 = vmatprep.subr.mxu0 0.0
    %533 = vmatpush1.msra.mxu0 0.0
    %534 = vmatprep.subr.mxu0 0.0
    %535 = vmatpush1.msra.mxu0 0.0
    %536 = vmatprep.subr.mxu0 0.0
    %537 = vmatpush1.msra.mxu0 0.0
    %538 = vmatprep.subr.mxu0 0.0
    %539 = vmatpush1.msra.mxu0 0.0
    %540 = vmatprep.subr.mxu0 0.0
    %541 = vmatpush1.msra.mxu0 0.0
    %542 = vmatprep.subr.mxu0 0.0
    %543 = vmatpush1.msra.mxu0 0.0
    %544 = vmatprep.subr.mxu0 0.0
    %545 = vmatpush1.msra.mxu0 0.0
    %546 = vmatprep.mubr.f32.mxu0 0.0
    %v547 = vand.u32 %v114, 4294901760
    %548 = vmatmul.mubr.f32.gmra.mrb[0].mxu0 %v547
    %v549 = vpop.f32.mrb[0].mxu0
    %v550 = vadd.f32 %v249, %v549
    %v551 = vpop.f32.mrb[0].mxu0
    %552 = vmatprep.mubr.f32.mxu0 0.0
    %v553 = vand.u32 %v116, 4294901760
    %554 = vmatmul.mubr.f32.gmra.mrb[0].mxu0 %v553
    %v555 = vpop.f32.mrb[0].mxu0
    %v556 = vadd.f32 %v259, %v555
    %v557 = vpop.f32.mrb[0].mxu0
    %558 = vmatprep.mubr.f32.mxu0 0.0
    %v559 = vand.u32 %v118, 4294901760
    %560 = vmatmul.mubr.f32.gmra.mrb[0].mxu0 %v559
    %v561 = vpop.f32.mrb[0].mxu0
    %v562 = vadd.f32 %v269, %v561
    %v563 = vpop.f32.mrb[0].mxu0
    %564 = vmatprep.mubr.f32.mxu0 0.0
    %v565 = vand.u32 %v120, 4294901760
    %566 = vmatmul.mubr.f32.gmra.mrb[0].mxu0 %v565
    %v567 = vpop.f32.mrb[0].mxu0
    %v568 = vadd.f32 %v279, %v567
    %v569 = vpop.f32.mrb[0].mxu0
    %570 = vmatprep.mubr.f32.mxu0 0.0
    %v571 = vand.u32 %v122, 4294901760
    %572 = vmatmul.mubr.f32.gmra.mrb[0].mxu0 %v571
    %v573 = vpop.f32.mrb[0].mxu0
    %v574 = vadd.f32 %v289, %v573
    %v575 = vpop.f32.mrb[0].mxu0
    %576 = vmatprep.mubr.f32.mxu0 0.0
    %v577 = vand.u32 %v124, 4294901760
    %578 = vmatmul.mubr.f32.gmra.mrb[0].mxu0 %v577
    %v579 = vpop.f32.mrb[0].mxu0
    %v580 = vadd.f32 %v299, %v579
    %v581 = vpop.f32.mrb[0].mxu0
    %582 = vmatprep.mubr.f32.mxu0 0.0
    %v583 = vand.u32 %v126, 4294901760
    %584 = vmatmul.mubr.f32.gmra.mrb[0].mxu0 %v583
    %v585 = vpop.f32.mrb[0].mxu0
    %v586 = vadd.f32 %v309, %v585
    %v587 = vpop.f32.mrb[0].mxu0
    %588 = vmatprep.mubr.f32.mxu0 0.0
    %v589 = vand.u32 %v128, 4294901760
    %590 = vmatmul.mubr.f32.gmra.mrb[0].mxu0 %v589
    %v591 = vpop.f32.mrb[0].mxu0
    %v592 = vadd.f32 %v319, %v591
    %v593 = vpop.f32.mrb[0].mxu0
    %594 = vmatprep.mubr.f32.mxu0 0.0
    %v595 = vand.u32 %v130, 4294901760
    %596 = vmatmul.mubr.f32.gmra.mrb[0].mxu0 %v595
    %v597 = vpop.f32.mrb[0].mxu0
    %v598 = vadd.f32 %v329, %v597
    %v599 = vpop.f32.mrb[0].mxu0
    %600 = vmatprep.mubr.f32.mxu0 0.0
    %v601 = vand.u32 %v132, 4294901760
    %602 = vmatmul.mubr.f32.gmra.mrb[0].mxu0 %v601
    %v603 = vpop.f32.mrb[0].mxu0
    %v604 = vadd.f32 %v339, %v603
    %v605 = vpop.f32.mrb[0].mxu0
    %606 = vmatprep.mubr.f32.mxu0 0.0
    %v607 = vand.u32 %v134, 4294901760
    %608 = vmatmul.mubr.f32.gmra.mrb[0].mxu0 %v607
    %v609 = vpop.f32.mrb[0].mxu0
    %v610 = vadd.f32 %v349, %v609
    %v611 = vpop.f32.mrb[0].mxu0
    %612 = vmatprep.mubr.f32.mxu0 0.0
    %v613 = vand.u32 %v136, 4294901760
    %614 = vmatmul.mubr.f32.gmra.mrb[0].mxu0 %v613
    %v615 = vpop.f32.mrb[0].mxu0
    %v616 = vadd.f32 %v359, %v615
    %v617 = vpop.f32.mrb[0].mxu0
    %618 = vmatprep.mubr.f32.mxu0 0.0
    %v619 = vand.u32 %v138, 4294901760
    %620 = vmatmul.mubr.f32.gmra.mrb[0].mxu0 %v619
    %v621 = vpop.f32.mrb[0].mxu0
    %v622 = vadd.f32 %v369, %v621
    %v623 = vpop.f32.mrb[0].mxu0
    %624 = vmatprep.mubr.f32.mxu0 0.0
    %v625 = vand.u32 %v140, 4294901760
    %626 = vmatmul.mubr.f32.gmra.mrb[0].mxu0 %v625
    %v627 = vpop.f32.mrb[0].mxu0
    %v628 = vadd.f32 %v379, %v627
    %v629 = vpop.f32.mrb[0].mxu0
    %630 = vmatprep.mubr.f32.mxu0 0.0
    %v631 = vand.u32 %v142, 4294901760
    %632 = vmatmul.mubr.f32.gmra.mrb[0].mxu0 %v631
    %v633 = vpop.f32.mrb[0].mxu0
    %v634 = vadd.f32 %v389, %v633
    %v635 = vpop.f32.mrb[0].mxu0
    %636 = vmatprep.mubr.f32.mxu0 0.0
    %v637 = vand.u32 %v144, 4294901760
    %638 = vmatmul.mubr.f32.gmra.mrb[0].mxu0 %v637
    %v639 = vpop.f32.mrb[0].mxu0
    %v640 = vadd.f32 %v399, %v639
    %v641 = vpop.f32.mrb[0].mxu0
    %642 = vdwg.mxu0
    %643 = vmatprep.subr.mxu0 0.0
    %v644 = vand.u32 %v145, 4294901760
    %v645 = vsub.f32 %v145, %v644
    %646 = vmatpush1.msra.mxu0 %v645
    %647 = vmatprep.subr.mxu0 0.0
    %v648 = vand.u32 %v146, 4294901760
    %v649 = vsub.f32 %v146, %v648
    %650 = vmatpush1.msra.mxu0 %v649
    %651 = vmatprep.subr.mxu0 0.0
    %v652 = vand.u32 %v147, 4294901760
    %v653 = vsub.f32 %v147, %v652
    %654 = vmatpush1.msra.mxu0 %v653
    %655 = vmatprep.subr.mxu0 0.0
    %v656 = vand.u32 %v148, 4294901760
    %v657 = vsub.f32 %v148, %v656
    %658 = vmatpush1.msra.mxu0 %v657
    %659 = vmatprep.subr.mxu0 0.0
    %v660 = vand.u32 %v149, 4294901760
    %v661 = vsub.f32 %v149, %v660
    %662 = vmatpush1.msra.mxu0 %v661
    %663 = vmatprep.subr.mxu0 0.0
    %v664 = vand.u32 %v150, 4294901760
    %v665 = vsub.f32 %v150, %v664
    %666 = vmatpush1.msra.mxu0 %v665
    %667 = vmatprep.subr.mxu0 0.0
    %v668 = vand.u32 %v151, 4294901760
    %v669 = vsub.f32 %v151, %v668
    %670 = vmatpush1.msra.mxu0 %v669
    %671 = vmatprep.subr.mxu0 0.0
    %v672 = vand.u32 %v152, 4294901760
    %v673 = vsub.f32 %v152, %v672
    %674 = vmatpush1.msra.mxu0 %v673
    %675 = vmatprep.subr.mxu0 0.0
    %v676 = vand.u32 %v153, 4294901760
    %v677 = vsub.f32 %v153, %v676
    %678 = vmatpush1.msra.mxu0 %v677
    %679 = vmatprep.subr.mxu0 0.0
    %v680 = vand.u32 %v154, 4294901760
    %v681 = vsub.f32 %v154, %v680
    %682 = vmatpush1.msra.mxu0 %v681
    %683 = vmatprep.subr.mxu0 0.0
    %v684 = vand.u32 %v155, 4294901760
    %v685 = vsub.f32 %v155, %v684
    %686 = vmatpush1.msra.mxu0 %v685
    %687 = vmatprep.subr.mxu0 0.0
    %v688 = vand.u32 %v156, 4294901760
    %v689 = vsub.f32 %v156, %v688
    %690 = vmatpush1.msra.mxu0 %v689
    %691 = vmatprep.subr.mxu0 0.0
    %v692 = vand.u32 %v157, 4294901760
    %v693 = vsub.f32 %v157, %v692
    %694 = vmatpush1.msra.mxu0 %v693
    %695 = vmatprep.subr.mxu0 0.0
    %v696 = vand.u32 %v158, 4294901760
    %v697 = vsub.f32 %v158, %v696
    %698 = vmatpush1.msra.mxu0 %v697
    %699 = vmatprep.subr.mxu0 0.0
    %v700 = vand.u32 %v159, 4294901760
    %v701 = vsub.f32 %v159, %v700
    %702 = vmatpush1.msra.mxu0 %v701
    %703 = vmatprep.subr.mxu0 0.0
    %v704 = vand.u32 %v160, 4294901760
    %v705 = vsub.f32 %v160, %v704
    %706 = vmatpush1.msra.mxu0 %v705
    %707 = vmatprep.subr.mxu0 0.0
    %708 = vmatpush1.msra.mxu0 0.0
    %709 = vmatprep.subr.mxu0 0.0
    %710 = vmatpush1.msra.mxu0 0.0
    %711 = vmatprep.subr.mxu0 0.0
    %712 = vmatpush1.msra.mxu0 0.0
    %713 = vmatprep.subr.mxu0 0.0
    %714 = vmatpush1.msra.mxu0 0.0
    %715 = vmatprep.subr.mxu0 0.0
    %716 = vmatpush1.msra.mxu0 0.0
    %717 = vmatprep.subr.mxu0 0.0
    %718 = vmatpush1.msra.mxu0 0.0
    %719 = vmatprep.subr.mxu0 0.0
    %720 = vmatpush1.msra.mxu0 0.0
    %721 = vmatprep.subr.mxu0 0.0
    %722 = vmatpush1.msra.mxu0 0.0
    %723 = vmatprep.subr.mxu0 0.0
    %724 = vmatpush1.msra.mxu0 0.0
    %725 = vmatprep.subr.mxu0 0.0
    %726 = vmatpush1.msra.mxu0 0.0
    %727 = vmatprep.subr.mxu0 0.0
    %728 = vmatpush1.msra.mxu0 0.0
    %729 = vmatprep.subr.mxu0 0.0
    %730 = vmatpush1.msra.mxu0 0.0
    %731 = vmatprep.subr.mxu0 0.0
    %732 = vmatpush1.msra.mxu0 0.0
    %733 = vmatprep.subr.mxu0 0.0
    %734 = vmatpush1.msra.mxu0 0.0
    %735 = vmatprep.subr.mxu0 0.0
    %736 = vmatpush1.msra.mxu0 0.0
    %737 = vmatprep.subr.mxu0 0.0
    %738 = vmatpush1.msra.mxu0 0.0
    %739 = vmatprep.mubr.f32.mxu0 0.0
    %v740 = vand.u32 %v114, 4294901760
    %v741 = vsub.f32 %v114, %v740
    %742 = vmatmul.mubr.f32.gmra.mrb[0].mxu0 %v741
    %v743 = vpop.f32.mrb[0].mxu0
    %v744 = vadd.f32 %v550, %v743
    %v745 = vpop.f32.mrb[0].mxu0
    %746 = vmatprep.mubr.f32.mxu0 0.0
    %v747 = vand.u32 %v116, 4294901760
    %v748 = vsub.f32 %v116, %v747
    %749 = vmatmul.mubr.f32.gmra.mrb[0].mxu0 %v748
    %v750 = vpop.f32.mrb[0].mxu0
    %v751 = vadd.f32 %v556, %v750
    %v752 = vpop.f32.mrb[0].mxu0
    %753 = vmatprep.mubr.f32.mxu0 0.0
    %v754 = vand.u32 %v118, 4294901760
    %v755 = vsub.f32 %v118, %v754
    %756 = vmatmul.mubr.f32.gmra.mrb[0].mxu0 %v755
    %v757 = vpop.f32.mrb[0].mxu0
    %v758 = vadd.f32 %v562, %v757
    %v759 = vpop.f32.mrb[0].mxu0
    %760 = vmatprep.mubr.f32.mxu0 0.0
    %v761 = vand.u32 %v120, 4294901760
    %v762 = vsub.f32 %v120, %v761
    %763 = vmatmul.mubr.f32.gmra.mrb[0].mxu0 %v762
    %v764 = vpop.f32.mrb[0].mxu0
    %v765 = vadd.f32 %v568, %v764
    %v766 = vpop.f32.mrb[0].mxu0
    %767 = vmatprep.mubr.f32.mxu0 0.0
    %v768 = vand.u32 %v122, 4294901760
    %v769 = vsub.f32 %v122, %v768
    %770 = vmatmul.mubr.f32.gmra.mrb[0].mxu0 %v769
    %v771 = vpop.f32.mrb[0].mxu0
    %v772 = vadd.f32 %v574, %v771
    %v773 = vpop.f32.mrb[0].mxu0
    %774 = vmatprep.mubr.f32.mxu0 0.0
    %v775 = vand.u32 %v124, 4294901760
    %v776 = vsub.f32 %v124, %v775
    %777 = vmatmul.mubr.f32.gmra.mrb[0].mxu0 %v776
    %v778 = vpop.f32.mrb[0].mxu0
    %v779 = vadd.f32 %v580, %v778
    %v780 = vpop.f32.mrb[0].mxu0
    %781 = vmatprep.mubr.f32.mxu0 0.0
    %v782 = vand.u32 %v126, 4294901760
    %v783 = vsub.f32 %v126, %v782
    %784 = vmatmul.mubr.f32.gmra.mrb[0].mxu0 %v783
    %v785 = vpop.f32.mrb[0].mxu0
    %v786 = vadd.f32 %v586, %v785
    %v787 = vpop.f32.mrb[0].mxu0
    %788 = vmatprep.mubr.f32.mxu0 0.0
    %v789 = vand.u32 %v128, 4294901760
    %v790 = vsub.f32 %v128, %v789
    %791 = vmatmul.mubr.f32.gmra.mrb[0].mxu0 %v790
    %v792 = vpop.f32.mrb[0].mxu0
    %v793 = vadd.f32 %v592, %v792
    %v794 = vpop.f32.mrb[0].mxu0
    %795 = vmatprep.mubr.f32.mxu0 0.0
    %v796 = vand.u32 %v130, 4294901760
    %v797 = vsub.f32 %v130, %v796
    %798 = vmatmul.mubr.f32.gmra.mrb[0].mxu0 %v797
    %v799 = vpop.f32.mrb[0].mxu0
    %v800 = vadd.f32 %v598, %v799
    %v801 = vpop.f32.mrb[0].mxu0
    %802 = vmatprep.mubr.f32.mxu0 0.0
    %v803 = vand.u32 %v132, 4294901760
    %v804 = vsub.f32 %v132, %v803
    %805 = vmatmul.mubr.f32.gmra.mrb[0].mxu0 %v804
    %v806 = vpop.f32.mrb[0].mxu0
    %v807 = vadd.f32 %v604, %v806
    %v808 = vpop.f32.mrb[0].mxu0
    %809 = vmatprep.mubr.f32.mxu0 0.0
    %v810 = vand.u32 %v134, 4294901760
    %v811 = vsub.f32 %v134, %v810
    %812 = vmatmul.mubr.f32.gmra.mrb[0].mxu0 %v811
    %v813 = vpop.f32.mrb[0].mxu0
    %v814 = vadd.f32 %v610, %v813
    %v815 = vpop.f32.mrb[0].mxu0
    %816 = vmatprep.mubr.f32.mxu0 0.0
    %v817 = vand.u32 %v136, 4294901760
    %v818 = vsub.f32 %v136, %v817
    %819 = vmatmul.mubr.f32.gmra.mrb[0].mxu0 %v818
    %v820 = vpop.f32.mrb[0].mxu0
    %v821 = vadd.f32 %v616, %v820
    %v822 = vpop.f32.mrb[0].mxu0
    %823 = vmatprep.mubr.f32.mxu0 0.0
    %v824 = vand.u32 %v138, 4294901760
    %v825 = vsub.f32 %v138, %v824
    %826 = vmatmul.mubr.f32.gmra.mrb[0].mxu0 %v825
    %v827 = vpop.f32.mrb[0].mxu0
    %v828 = vadd.f32 %v622, %v827
    %v829 = vpop.f32.mrb[0].mxu0
    %830 = vmatprep.mubr.f32.mxu0 0.0
    %v831 = vand.u32 %v140, 4294901760
    %v832 = vsub.f32 %v140, %v831
    %833 = vmatmul.mubr.f32.gmra.mrb[0].mxu0 %v832
    %v834 = vpop.f32.mrb[0].mxu0
    %v835 = vadd.f32 %v628, %v834
    %v836 = vpop.f32.mrb[0].mxu0
    %837 = vmatprep.mubr.f32.mxu0 0.0
    %v838 = vand.u32 %v142, 4294901760
    %v839 = vsub.f32 %v142, %v838
    %840 = vmatmul.mubr.f32.gmra.mrb[0].mxu0 %v839
    %v841 = vpop.f32.mrb[0].mxu0
    %v842 = vadd.f32 %v634, %v841
    %v843 = vpop.f32.mrb[0].mxu0
    %844 = vmatprep.mubr.f32.mxu0 0.0
    %v845 = vand.u32 %v144, 4294901760
    %v846 = vsub.f32 %v144, %v845
    %847 = vmatmul.mubr.f32.gmra.mrb[0].mxu0 %v846
    %v848 = vpop.f32.mrb[0].mxu0
    %v849 = vadd.f32 %v640, %v848
    %v850 = vpop.f32.mrb[0].mxu0
    %851 = vdwg.mxu0
    %852 = vmatprep.subr.mxu0 0.0
    %v853 = vand.u32 %v145, 4294901760
    %854 = vmatpush1.msra.mxu0 %v853
    %855 = vmatprep.subr.mxu0 0.0
    %v856 = vand.u32 %v146, 4294901760
    %857 = vmatpush1.msra.mxu0 %v856
    %858 = vmatprep.subr.mxu0 0.0
    %v859 = vand.u32 %v147, 4294901760
    %860 = vmatpush1.msra.mxu0 %v859
    %861 = vmatprep.subr.mxu0 0.0
    %v862 = vand.u32 %v148, 4294901760
    %863 = vmatpush1.msra.mxu0 %v862
    %864 = vmatprep.subr.mxu0 0.0
    %v865 = vand.u32 %v149, 4294901760
    %866 = vmatpush1.msra.mxu0 %v865
    %867 = vmatprep.subr.mxu0 0.0
    %v868 = vand.u32 %v150, 4294901760
    %869 = vmatpush1.msra.mxu0 %v868
    %870 = vmatprep.subr.mxu0 0.0
    %v871 = vand.u32 %v151, 4294901760
    %872 = vmatpush1.msra.mxu0 %v871
    %873 = vmatprep.subr.mxu0 0.0
    %v874 = vand.u32 %v152, 4294901760
    %875 = vmatpush1.msra.mxu0 %v874
    %876 = vmatprep.subr.mxu0 0.0
    %v877 = vand.u32 %v153, 4294901760
    %878 = vmatpush1.msra.mxu0 %v877
    %879 = vmatprep.subr.mxu0 0.0
    %v880 = vand.u32 %v154, 4294901760
    %881 = vmatpush1.msra.mxu0 %v880
    %882 = vmatprep.subr.mxu0 0.0
    %v883 = vand.u32 %v155, 4294901760
    %884 = vmatpush1.msra.mxu0 %v883
    %885 = vmatprep.subr.mxu0 0.0
    %v886 = vand.u32 %v156, 4294901760
    %887 = vmatpush1.msra.mxu0 %v886
    %888 = vmatprep.subr.mxu0 0.0
    %v889 = vand.u32 %v157, 4294901760
    %890 = vmatpush1.msra.mxu0 %v889
    %891 = vmatprep.subr.mxu0 0.0
    %v892 = vand.u32 %v158, 4294901760
    %893 = vmatpush1.msra.mxu0 %v892
    %894 = vmatprep.subr.mxu0 0.0
    %v895 = vand.u32 %v159, 4294901760
    %896 = vmatpush1.msra.mxu0 %v895
    %897 = vmatprep.subr.mxu0 0.0
    %v898 = vand.u32 %v160, 4294901760
    %899 = vmatpush1.msra.mxu0 %v898
    %900 = vmatprep.subr.mxu0 0.0
    %901 = vmatpush1.msra.mxu0 0.0
    %902 = vmatprep.subr.mxu0 0.0
    %903 = vmatpush1.msra.mxu0 0.0
    %904 = vmatprep.subr.mxu0 0.0
    %905 = vmatpush1.msra.mxu0 0.0
    %906 = vmatprep.subr.mxu0 0.0
    %907 = vmatpush1.msra.mxu0 0.0
    %908 = vmatprep.subr.mxu0 0.0
    %909 = vmatpush1.msra.mxu0 0.0
    %910 = vmatprep.subr.mxu0 0.0
    %911 = vmatpush1.msra.mxu0 0.0
    %912 = vmatprep.subr.mxu0 0.0
    %913 = vmatpush1.msra.mxu0 0.0
    %914 = vmatprep.subr.mxu0 0.0
    %915 = vmatpush1.msra.mxu0 0.0
    %916 = vmatprep.subr.mxu0 0.0
    %917 = vmatpush1.msra.mxu0 0.0
    %918 = vmatprep.subr.mxu0 0.0
    %919 = vmatpush1.msra.mxu0 0.0
    %920 = vmatprep.subr.mxu0 0.0
    %921 = vmatpush1.msra.mxu0 0.0
    %922 = vmatprep.subr.mxu0 0.0
    %923 = vmatpush1.msra.mxu0 0.0
    %924 = vmatprep.subr.mxu0 0.0
    %925 = vmatpush1.msra.mxu0 0.0
    %926 = vmatprep.subr.mxu0 0.0
    %927 = vmatpush1.msra.mxu0 0.0
    %928 = vmatprep.subr.mxu0 0.0
    %929 = vmatpush1.msra.mxu0 0.0
    %930 = vmatprep.subr.mxu0 0.0
    %931 = vmatpush1.msra.mxu0 0.0
    %932 = vmatprep.mubr.f32.mxu0 0.0
    %v933 = vand.u32 %v114, 4294901760
    %v934 = vsub.f32 %v114, %v933
    %v935 = vand.u32 %v934, 4294901760
    %936 = vmatmul.mubr.f32.gmra.mrb[0].mxu0 %v935
    %v937 = vpop.f32.mrb[0].mxu0
    %v938 = vadd.f32 %v744, %v937
    %v939 = vpop.f32.mrb[0].mxu0
    %940 = vmatprep.mubr.f32.mxu0 0.0
    %v941 = vand.u32 %v116, 4294901760
    %v942 = vsub.f32 %v116, %v941
    %v943 = vand.u32 %v942, 4294901760
    %944 = vmatmul.mubr.f32.gmra.mrb[0].mxu0 %v943
    %v945 = vpop.f32.mrb[0].mxu0
    %v946 = vadd.f32 %v751, %v945
    %v947 = vpop.f32.mrb[0].mxu0
    %948 = vmatprep.mubr.f32.mxu0 0.0
    %v949 = vand.u32 %v118, 4294901760
    %v950 = vsub.f32 %v118, %v949
    %v951 = vand.u32 %v950, 4294901760
    %952 = vmatmul.mubr.f32.gmra.mrb[0].mxu0 %v951
    %v953 = vpop.f32.mrb[0].mxu0
    %v954 = vadd.f32 %v758, %v953
    %v955 = vpop.f32.mrb[0].mxu0
    %956 = vmatprep.mubr.f32.mxu0 0.0
    %v957 = vand.u32 %v120, 4294901760
    %v958 = vsub.f32 %v120, %v957
    %v959 = vand.u32 %v958, 4294901760
    %960 = vmatmul.mubr.f32.gmra.mrb[0].mxu0 %v959
    %v961 = vpop.f32.mrb[0].mxu0
    %v962 = vadd.f32 %v765, %v961
    %v963 = vpop.f32.mrb[0].mxu0
    %964 = vmatprep.mubr.f32.mxu0 0.0
    %v965 = vand.u32 %v122, 4294901760
    %v966 = vsub.f32 %v122, %v965
    %v967 = vand.u32 %v966, 4294901760
    %968 = vmatmul.mubr.f32.gmra.mrb[0].mxu0 %v967
    %v969 = vpop.f32.mrb[0].mxu0
    %v970 = vadd.f32 %v772, %v969
    %v971 = vpop.f32.mrb[0].mxu0
    %972 = vmatprep.mubr.f32.mxu0 0.0
    %v973 = vand.u32 %v124, 4294901760
    %v974 = vsub.f32 %v124, %v973
    %v975 = vand.u32 %v974, 4294901760
    %976 = vmatmul.mubr.f32.gmra.mrb[0].mxu0 %v975
    %v977 = vpop.f32.mrb[0].mxu0
    %v978 = vadd.f32 %v779, %v977
    %v979 = vpop.f32.mrb[0].mxu0
    %980 = vmatprep.mubr.f32.mxu0 0.0
    %v981 = vand.u32 %v126, 4294901760
    %v982 = vsub.f32 %v126, %v981
    %v983 = vand.u32 %v982, 4294901760
    %984 = vmatmul.mubr.f32.gmra.mrb[0].mxu0 %v983
    %v985 = vpop.f32.mrb[0].mxu0
    %v986 = vadd.f32 %v786, %v985
    %v987 = vpop.f32.mrb[0].mxu0
    %988 = vmatprep.mubr.f32.mxu0 0.0
    %v989 = vand.u32 %v128, 4294901760
    %v990 = vsub.f32 %v128, %v989
    %v991 = vand.u32 %v990, 4294901760
    %992 = vmatmul.mubr.f32.gmra.mrb[0].mxu0 %v991
    %v993 = vpop.f32.mrb[0].mxu0
    %v994 = vadd.f32 %v793, %v993
    %v995 = vpop.f32.mrb[0].mxu0
    %996 = vmatprep.mubr.f32.mxu0 0.0
    %v997 = vand.u32 %v130, 4294901760
    %v998 = vsub.f32 %v130, %v997
    %v999 = vand.u32 %v998, 4294901760
    %1000 = vmatmul.mubr.f32.gmra.mrb[0].mxu0 %v999
    %v1001 = vpop.f32.mrb[0].mxu0
    %v1002 = vadd.f32 %v800, %v1001
    %v1003 = vpop.f32.mrb[0].mxu0
    %1004 = vmatprep.mubr.f32.mxu0 0.0
    %v1005 = vand.u32 %v132, 4294901760
    %v1006 = vsub.f32 %v132, %v1005
    %v1007 = vand.u32 %v1006, 4294901760
    %1008 = vmatmul.mubr.f32.gmra.mrb[0].mxu0 %v1007
    %v1009 = vpop.f32.mrb[0].mxu0
    %v1010 = vadd.f32 %v807, %v1009
    %v1011 = vpop.f32.mrb[0].mxu0
    %1012 = vmatprep.mubr.f32.mxu0 0.0
    %v1013 = vand.u32 %v134, 4294901760
    %v1014 = vsub.f32 %v134, %v1013
    %v1015 = vand.u32 %v1014, 4294901760
    %1016 = vmatmul.mubr.f32.gmra.mrb[0].mxu0 %v1015
    %v1017 = vpop.f32.mrb[0].mxu0
    %v1018 = vadd.f32 %v814, %v1017
    %v1019 = vpop.f32.mrb[0].mxu0
    %1020 = vmatprep.mubr.f32.mxu0 0.0
    %v1021 = vand.u32 %v136, 4294901760
    %v1022 = vsub.f32 %v136, %v1021
    %v1023 = vand.u32 %v1022, 4294901760
    %1024 = vmatmul.mubr.f32.gmra.mrb[0].mxu0 %v1023
    %v1025 = vpop.f32.mrb[0].mxu0
    %v1026 = vadd.f32 %v821, %v1025
    %v1027 = vpop.f32.mrb[0].mxu0
    %1028 = vmatprep.mubr.f32.mxu0 0.0
    %v1029 = vand.u32 %v138, 4294901760
    %v1030 = vsub.f32 %v138, %v1029
    %v1031 = vand.u32 %v1030, 4294901760
    %1032 = vmatmul.mubr.f32.gmra.mrb[0].mxu0 %v1031
    %v1033 = vpop.f32.mrb[0].mxu0
    %v1034 = vadd.f32 %v828, %v1033
    %v1035 = vpop.f32.mrb[0].mxu0
    %1036 = vmatprep.mubr.f32.mxu0 0.0
    %v1037 = vand.u32 %v140, 4294901760
    %v1038 = vsub.f32 %v140, %v1037
    %v1039 = vand.u32 %v1038, 4294901760
    %1040 = vmatmul.mubr.f32.gmra.mrb[0].mxu0 %v1039
    %v1041 = vpop.f32.mrb[0].mxu0
    %v1042 = vadd.f32 %v835, %v1041
    %v1043 = vpop.f32.mrb[0].mxu0
    %1044 = vmatprep.mubr.f32.mxu0 0.0
    %v1045 = vand.u32 %v142, 4294901760
    %v1046 = vsub.f32 %v142, %v1045
    %v1047 = vand.u32 %v1046, 4294901760
    %1048 = vmatmul.mubr.f32.gmra.mrb[0].mxu0 %v1047
    %v1049 = vpop.f32.mrb[0].mxu0
    %v1050 = vadd.f32 %v842, %v1049
    %v1051 = vpop.f32.mrb[0].mxu0
    %1052 = vmatprep.mubr.f32.mxu0 0.0
    %v1053 = vand.u32 %v144, 4294901760
    %v1054 = vsub.f32 %v144, %v1053
    %v1055 = vand.u32 %v1054, 4294901760
    %1056 = vmatmul.mubr.f32.gmra.mrb[0].mxu0 %v1055
    %v1057 = vpop.f32.mrb[0].mxu0
    %v1058 = vadd.f32 %v849, %v1057
    %v1059 = vpop.f32.mrb[0].mxu0
    %1060 = vdwg.mxu0
    %1061 = vmatprep.subr.mxu0 0.0
    %v1062 = vand.u32 %v145, 4294901760
    %v1063 = vsub.f32 %v145, %v1062
    %v1064 = vand.u32 %v1063, 4294901760
    %1065 = vmatpush1.msra.mxu0 %v1064
    %1066 = vmatprep.subr.mxu0 0.0
    %v1067 = vand.u32 %v146, 4294901760
    %v1068 = vsub.f32 %v146, %v1067
    %v1069 = vand.u32 %v1068, 4294901760
    %1070 = vmatpush1.msra.mxu0 %v1069
    %1071 = vmatprep.subr.mxu0 0.0
    %v1072 = vand.u32 %v147, 4294901760
    %v1073 = vsub.f32 %v147, %v1072
    %v1074 = vand.u32 %v1073, 4294901760
    %1075 = vmatpush1.msra.mxu0 %v1074
    %1076 = vmatprep.subr.mxu0 0.0
    %v1077 = vand.u32 %v148, 4294901760
    %v1078 = vsub.f32 %v148, %v1077
    %v1079 = vand.u32 %v1078, 4294901760
    %1080 = vmatpush1.msra.mxu0 %v1079
    %1081 = vmatprep.subr.mxu0 0.0
    %v1082 = vand.u32 %v149, 4294901760
    %v1083 = vsub.f32 %v149, %v1082
    %v1084 = vand.u32 %v1083, 4294901760
    %1085 = vmatpush1.msra.mxu0 %v1084
    %1086 = vmatprep.subr.mxu0 0.0
    %v1087 = vand.u32 %v150, 4294901760
    %v1088 = vsub.f32 %v150, %v1087
    %v1089 = vand.u32 %v1088, 4294901760
    %1090 = vmatpush1.msra.mxu0 %v1089
    %1091 = vmatprep.subr.mxu0 0.0
    %v1092 = vand.u32 %v151, 4294901760
    %v1093 = vsub.f32 %v151, %v1092
    %v1094 = vand.u32 %v1093, 4294901760
    %1095 = vmatpush1.msra.mxu0 %v1094
    %1096 = vmatprep.subr.mxu0 0.0
    %v1097 = vand.u32 %v152, 4294901760
    %v1098 = vsub.f32 %v152, %v1097
    %v1099 = vand.u32 %v1098, 4294901760
    %1100 = vmatpush1.msra.mxu0 %v1099
    %1101 = vmatprep.subr.mxu0 0.0
    %v1102 = vand.u32 %v153, 4294901760
    %v1103 = vsub.f32 %v153, %v1102
    %v1104 = vand.u32 %v1103, 4294901760
    %1105 = vmatpush1.msra.mxu0 %v1104
    %1106 = vmatprep.subr.mxu0 0.0
    %v1107 = vand.u32 %v154, 4294901760
    %v1108 = vsub.f32 %v154, %v1107
    %v1109 = vand.u32 %v1108, 4294901760
    %1110 = vmatpush1.msra.mxu0 %v1109
    %1111 = vmatprep.subr.mxu0 0.0
    %v1112 = vand.u32 %v155, 4294901760
    %v1113 = vsub.f32 %v155, %v1112
    %v1114 = vand.u32 %v1113, 4294901760
    %1115 = vmatpush1.msra.mxu0 %v1114
    %1116 = vmatprep.subr.mxu0 0.0
    %v1117 = vand.u32 %v156, 4294901760
    %v1118 = vsub.f32 %v156, %v1117
    %v1119 = vand.u32 %v1118, 4294901760
    %1120 = vmatpush1.msra.mxu0 %v1119
    %1121 = vmatprep.subr.mxu0 0.0
    %v1122 = vand.u32 %v157, 4294901760
    %v1123 = vsub.f32 %v157, %v1122
    %v1124 = vand.u32 %v1123, 4294901760
    %1125 = vmatpush1.msra.mxu0 %v1124
    %1126 = vmatprep.subr.mxu0 0.0
    %v1127 = vand.u32 %v158, 4294901760
    %v1128 = vsub.f32 %v158, %v1127
    %v1129 = vand.u32 %v1128, 4294901760
    %1130 = vmatpush1.msra.mxu0 %v1129
    %1131 = vmatprep.subr.mxu0 0.0
    %v1132 = vand.u32 %v159, 4294901760
    %v1133 = vsub.f32 %v159, %v1132
    %v1134 = vand.u32 %v1133, 4294901760
    %1135 = vmatpush1.msra.mxu0 %v1134
    %1136 = vmatprep.subr.mxu0 0.0
    %v1137 = vand.u32 %v160, 4294901760
    %v1138 = vsub.f32 %v160, %v1137
    %v1139 = vand.u32 %v1138, 4294901760
    %1140 = vmatpush1.msra.mxu0 %v1139
    %1141 = vmatprep.subr.mxu0 0.0
    %1142 = vmatpush1.msra.mxu0 0.0
    %1143 = vmatprep.subr.mxu0 0.0
    %1144 = vmatpush1.msra.mxu0 0.0
    %1145 = vmatprep.subr.mxu0 0.0
    %1146 = vmatpush1.msra.mxu0 0.0
    %1147 = vmatprep.subr.mxu0 0.0
    %1148 = vmatpush1.msra.mxu0 0.0
    %1149 = vmatprep.subr.mxu0 0.0
    %1150 = vmatpush1.msra.mxu0 0.0
    %1151 = vmatprep.subr.mxu0 0.0
    %1152 = vmatpush1.msra.mxu0 0.0
    %1153 = vmatprep.subr.mxu0 0.0
    %1154 = vmatpush1.msra.mxu0 0.0
    %1155 = vmatprep.subr.mxu0 0.0
    %1156 = vmatpush1.msra.mxu0 0.0
    %1157 = vmatprep.subr.mxu0 0.0
    %1158 = vmatpush1.msra.mxu0 0.0
    %1159 = vmatprep.subr.mxu0 0.0
    %1160 = vmatpush1.msra.mxu0 0.0
    %1161 = vmatprep.subr.mxu0 0.0
    %1162 = vmatpush1.msra.mxu0 0.0
    %1163 = vmatprep.subr.mxu0 0.0
    %1164 = vmatpush1.msra.mxu0 0.0
    %1165 = vmatprep.subr.mxu0 0.0
    %1166 = vmatpush1.msra.mxu0 0.0
    %1167 = vmatprep.subr.mxu0 0.0
    %1168 = vmatpush1.msra.mxu0 0.0
    %1169 = vmatprep.subr.mxu0 0.0
    %1170 = vmatpush1.msra.mxu0 0.0
    %1171 = vmatprep.subr.mxu0 0.0
    %1172 = vmatpush1.msra.mxu0 0.0
    %1173 = vmatprep.mubr.f32.mxu0 0.0
    %v1174 = vand.u32 %v114, 4294901760
    %1175 = vmatmul.mubr.f32.gmra.mrb[0].mxu0 %v1174
    %v1176 = vpop.f32.mrb[0].mxu0
    %v1177 = vadd.f32 %v938, %v1176
    %v1178 = vpop.f32.mrb[0].mxu0
    %1179 = vmatprep.mubr.f32.mxu0 0.0
    %v1180 = vand.u32 %v116, 4294901760
    %1181 = vmatmul.mubr.f32.gmra.mrb[0].mxu0 %v1180
    %v1182 = vpop.f32.mrb[0].mxu0
    %v1183 = vadd.f32 %v946, %v1182
    %v1184 = vpop.f32.mrb[0].mxu0
    %1185 = vmatprep.mubr.f32.mxu0 0.0
    %v1186 = vand.u32 %v118, 4294901760
    %1187 = vmatmul.mubr.f32.gmra.mrb[0].mxu0 %v1186
    %v1188 = vpop.f32.mrb[0].mxu0
    %v1189 = vadd.f32 %v954, %v1188
    %v1190 = vpop.f32.mrb[0].mxu0
    %1191 = vmatprep.mubr.f32.mxu0 0.0
    %v1192 = vand.u32 %v120, 4294901760
    %1193 = vmatmul.mubr.f32.gmra.mrb[0].mxu0 %v1192
    %v1194 = vpop.f32.mrb[0].mxu0
    %v1195 = vadd.f32 %v962, %v1194
    %v1196 = vpop.f32.mrb[0].mxu0
    %1197 = vmatprep.mubr.f32.mxu0 0.0
    %v1198 = vand.u32 %v122, 4294901760
    %1199 = vmatmul.mubr.f32.gmra.mrb[0].mxu0 %v1198
    %v1200 = vpop.f32.mrb[0].mxu0
    %v1201 = vadd.f32 %v970, %v1200
    %v1202 = vpop.f32.mrb[0].mxu0
    %1203 = vmatprep.mubr.f32.mxu0 0.0
    %v1204 = vand.u32 %v124, 4294901760
    %1205 = vmatmul.mubr.f32.gmra.mrb[0].mxu0 %v1204
    %v1206 = vpop.f32.mrb[0].mxu0
    %v1207 = vadd.f32 %v978, %v1206
    %v1208 = vpop.f32.mrb[0].mxu0
    %1209 = vmatprep.mubr.f32.mxu0 0.0
    %v1210 = vand.u32 %v126, 4294901760
    %1211 = vmatmul.mubr.f32.gmra.mrb[0].mxu0 %v1210
    %v1212 = vpop.f32.mrb[0].mxu0
    %v1213 = vadd.f32 %v986, %v1212
    %v1214 = vpop.f32.mrb[0].mxu0
    %1215 = vmatprep.mubr.f32.mxu0 0.0
    %v1216 = vand.u32 %v128, 4294901760
    %1217 = vmatmul.mubr.f32.gmra.mrb[0].mxu0 %v1216
    %v1218 = vpop.f32.mrb[0].mxu0
    %v1219 = vadd.f32 %v994, %v1218
    %v1220 = vpop.f32.mrb[0].mxu0
    %1221 = vmatprep.mubr.f32.mxu0 0.0
    %v1222 = vand.u32 %v130, 4294901760
    %1223 = vmatmul.mubr.f32.gmra.mrb[0].mxu0 %v1222
    %v1224 = vpop.f32.mrb[0].mxu0
    %v1225 = vadd.f32 %v1002, %v1224
    %v1226 = vpop.f32.mrb[0].mxu0
    %1227 = vmatprep.mubr.f32.mxu0 0.0
    %v1228 = vand.u32 %v132, 4294901760
    %1229 = vmatmul.mubr.f32.gmra.mrb[0].mxu0 %v1228
    %v1230 = vpop.f32.mrb[0].mxu0
    %v1231 = vadd.f32 %v1010, %v1230
    %v1232 = vpop.f32.mrb[0].mxu0
    %1233 = vmatprep.mubr.f32.mxu0 0.0
    %v1234 = vand.u32 %v134, 4294901760
    %1235 = vmatmul.mubr.f32.gmra.mrb[0].mxu0 %v1234
    %v1236 = vpop.f32.mrb[0].mxu0
    %v1237 = vadd.f32 %v1018, %v1236
    %v1238 = vpop.f32.mrb[0].mxu0
    %1239 = vmatprep.mubr.f32.mxu0 0.0
    %v1240 = vand.u32 %v136, 4294901760
    %1241 = vmatmul.mubr.f32.gmra.mrb[0].mxu0 %v1240
    %v1242 = vpop.f32.mrb[0].mxu0
    %v1243 = vadd.f32 %v1026, %v1242
    %v1244 = vpop.f32.mrb[0].mxu0
    %1245 = vmatprep.mubr.f32.mxu0 0.0
    %v1246 = vand.u32 %v138, 4294901760
    %1247 = vmatmul.mubr.f32.gmra.mrb[0].mxu0 %v1246
    %v1248 = vpop.f32.mrb[0].mxu0
    %v1249 = vadd.f32 %v1034, %v1248
    %v1250 = vpop.f32.mrb[0].mxu0
    %1251 = vmatprep.mubr.f32.mxu0 0.0
    %v1252 = vand.u32 %v140, 4294901760
    %1253 = vmatmul.mubr.f32.gmra.mrb[0].mxu0 %v1252
    %v1254 = vpop.f32.mrb[0].mxu0
    %v1255 = vadd.f32 %v1042, %v1254
    %v1256 = vpop.f32.mrb[0].mxu0
    %1257 = vmatprep.mubr.f32.mxu0 0.0
    %v1258 = vand.u32 %v142, 4294901760
    %1259 = vmatmul.mubr.f32.gmra.mrb[0].mxu0 %v1258
    %v1260 = vpop.f32.mrb[0].mxu0
    %v1261 = vadd.f32 %v1050, %v1260
    %v1262 = vpop.f32.mrb[0].mxu0
    %1263 = vmatprep.mubr.f32.mxu0 0.0
    %v1264 = vand.u32 %v144, 4294901760
    %1265 = vmatmul.mubr.f32.gmra.mrb[0].mxu0 %v1264
    %v1266 = vpop.f32.mrb[0].mxu0
    %v1267 = vadd.f32 %v1058, %v1266
    %v1268 = vpop.f32.mrb[0].mxu0
    %1269 = vdwg.mxu0
    %1270 = vmatprep.subr.mxu0 0.0
    %v1271 = vand.u32 %v145, 4294901760
    %1272 = vmatpush1.msra.mxu0 %v1271
    %1273 = vmatprep.subr.mxu0 0.0
    %v1274 = vand.u32 %v146, 4294901760
    %1275 = vmatpush1.msra.mxu0 %v1274
    %1276 = vmatprep.subr.mxu0 0.0
    %v1277 = vand.u32 %v147, 4294901760
    %1278 = vmatpush1.msra.mxu0 %v1277
    %1279 = vmatprep.subr.mxu0 0.0
    %v1280 = vand.u32 %v148, 4294901760
    %1281 = vmatpush1.msra.mxu0 %v1280
    %1282 = vmatprep.subr.mxu0 0.0
    %v1283 = vand.u32 %v149, 4294901760
    %1284 = vmatpush1.msra.mxu0 %v1283
    %1285 = vmatprep.subr.mxu0 0.0
    %v1286 = vand.u32 %v150, 4294901760
    %1287 = vmatpush1.msra.mxu0 %v1286
    %1288 = vmatprep.subr.mxu0 0.0
    %v1289 = vand.u32 %v151, 4294901760
    %1290 = vmatpush1.msra.mxu0 %v1289
    %1291 = vmatprep.subr.mxu0 0.0
    %v1292 = vand.u32 %v152, 4294901760
    %1293 = vmatpush1.msra.mxu0 %v1292
    %1294 = vmatprep.subr.mxu0 0.0
    %v1295 = vand.u32 %v153, 4294901760
    %1296 = vmatpush1.msra.mxu0 %v1295
    %1297 = vmatprep.subr.mxu0 0.0
    %v1298 = vand.u32 %v154, 4294901760
    %1299 = vmatpush1.msra.mxu0 %v1298
    %1300 = vmatprep.subr.mxu0 0.0
    %v1301 = vand.u32 %v155, 4294901760
    %1302 = vmatpush1.msra.mxu0 %v1301
    %1303 = vmatprep.subr.mxu0 0.0
    %v1304 = vand.u32 %v156, 4294901760
    %1305 = vmatpush1.msra.mxu0 %v1304
    %1306 = vmatprep.subr.mxu0 0.0
    %v1307 = vand.u32 %v157, 4294901760
    %1308 = vmatpush1.msra.mxu0 %v1307
    %1309 = vmatprep.subr.mxu0 0.0
    %v1310 = vand.u32 %v158, 4294901760
    %1311 = vmatpush1.msra.mxu0 %v1310
    %1312 = vmatprep.subr.mxu0 0.0
    %v1313 = vand.u32 %v159, 4294901760
    %1314 = vmatpush1.msra.mxu0 %v1313
    %1315 = vmatprep.subr.mxu0 0.0
    %v1316 = vand.u32 %v160, 4294901760
    %1317 = vmatpush1.msra.mxu0 %v1316
    %1318 = vmatprep.subr.mxu0 0.0
    %1319 = vmatpush1.msra.mxu0 0.0
    %1320 = vmatprep.subr.mxu0 0.0
    %1321 = vmatpush1.msra.mxu0 0.0
    %1322 = vmatprep.subr.mxu0 0.0
    %1323 = vmatpush1.msra.mxu0 0.0
    %1324 = vmatprep.subr.mxu0 0.0
    %1325 = vmatpush1.msra.mxu0 0.0
    %1326 = vmatprep.subr.mxu0 0.0
    %1327 = vmatpush1.msra.mxu0 0.0
    %1328 = vmatprep.subr.mxu0 0.0
    %1329 = vmatpush1.msra.mxu0 0.0
    %1330 = vmatprep.subr.mxu0 0.0
    %1331 = vmatpush1.msra.mxu0 0.0
    %1332 = vmatprep.subr.mxu0 0.0
    %1333 = vmatpush1.msra.mxu0 0.0
    %1334 = vmatprep.subr.mxu0 0.0
    %1335 = vmatpush1.msra.mxu0 0.0
    %1336 = vmatprep.subr.mxu0 0.0
    %1337 = vmatpush1.msra.mxu0 0.0
    %1338 = vmatprep.subr.mxu0 0.0
    %1339 = vmatpush1.msra.mxu0 0.0
    %1340 = vmatprep.subr.mxu0 0.0
    %1341 = vmatpush1.msra.mxu0 0.0
    %1342 = vmatprep.subr.mxu0 0.0
    %1343 = vmatpush1.msra.mxu0 0.0
    %1344 = vmatprep.subr.mxu0 0.0
    %1345 = vmatpush1.msra.mxu0 0.0
    %1346 = vmatprep.subr.mxu0 0.0
    %1347 = vmatpush1.msra.mxu0 0.0
    %1348 = vmatprep.subr.mxu0 0.0
    %1349 = vmatpush1.msra.mxu0 0.0
    %1350 = vmatprep.mubr.f32.mxu0 0.0
    %v1351 = vand.u32 %v114, 4294901760
    %1352 = vmatmul.mubr.f32.gmra.mrb[0].mxu0 %v1351
    %v1353 = vpop.f32.mrb[0].mxu0
    %v1354 = vadd.f32 %v1177, %v1353
    %v1355 = vpop.f32.mrb[0].mxu0
    %1356 = vmatprep.mubr.f32.mxu0 0.0
    %v1357 = vand.u32 %v116, 4294901760
    %1358 = vmatmul.mubr.f32.gmra.mrb[0].mxu0 %v1357
    %v1359 = vpop.f32.mrb[0].mxu0
    %v1360 = vadd.f32 %v1183, %v1359
    %v1361 = vpop.f32.mrb[0].mxu0
    %1362 = vmatprep.mubr.f32.mxu0 0.0
    %v1363 = vand.u32 %v118, 4294901760
    %1364 = vmatmul.mubr.f32.gmra.mrb[0].mxu0 %v1363
    %v1365 = vpop.f32.mrb[0].mxu0
    %v1366 = vadd.f32 %v1189, %v1365
    %v1367 = vpop.f32.mrb[0].mxu0
    %1368 = vmatprep.mubr.f32.mxu0 0.0
    %v1369 = vand.u32 %v120, 4294901760
    %1370 = vmatmul.mubr.f32.gmra.mrb[0].mxu0 %v1369
    %v1371 = vpop.f32.mrb[0].mxu0
    %v1372 = vadd.f32 %v1195, %v1371
    %v1373 = vpop.f32.mrb[0].mxu0
    %1374 = vmatprep.mubr.f32.mxu0 0.0
    %v1375 = vand.u32 %v122, 4294901760
    %1376 = vmatmul.mubr.f32.gmra.mrb[0].mxu0 %v1375
    %v1377 = vpop.f32.mrb[0].mxu0
    %v1378 = vadd.f32 %v1201, %v1377
    %v1379 = vpop.f32.mrb[0].mxu0
    %1380 = vmatprep.mubr.f32.mxu0 0.0
    %v1381 = vand.u32 %v124, 4294901760
    %1382 = vmatmul.mubr.f32.gmra.mrb[0].mxu0 %v1381
    %v1383 = vpop.f32.mrb[0].mxu0
    %v1384 = vadd.f32 %v1207, %v1383
    %v1385 = vpop.f32.mrb[0].mxu0
    %1386 = vmatprep.mubr.f32.mxu0 0.0
    %v1387 = vand.u32 %v126, 4294901760
    %1388 = vmatmul.mubr.f32.gmra.mrb[0].mxu0 %v1387
    %v1389 = vpop.f32.mrb[0].mxu0
    %v1390 = vadd.f32 %v1213, %v1389
    %v1391 = vpop.f32.mrb[0].mxu0
    %1392 = vmatprep.mubr.f32.mxu0 0.0
    %v1393 = vand.u32 %v128, 4294901760
    %1394 = vmatmul.mubr.f32.gmra.mrb[0].mxu0 %v1393
    %v1395 = vpop.f32.mrb[0].mxu0
    %v1396 = vadd.f32 %v1219, %v1395
    %v1397 = vpop.f32.mrb[0].mxu0
    %1398 = vmatprep.mubr.f32.mxu0 0.0
    %v1399 = vand.u32 %v130, 4294901760
    %1400 = vmatmul.mubr.f32.gmra.mrb[0].mxu0 %v1399
    %v1401 = vpop.f32.mrb[0].mxu0
    %v1402 = vadd.f32 %v1225, %v1401
    %v1403 = vpop.f32.mrb[0].mxu0
    %1404 = vmatprep.mubr.f32.mxu0 0.0
    %v1405 = vand.u32 %v132, 4294901760
    %1406 = vmatmul.mubr.f32.gmra.mrb[0].mxu0 %v1405
    %v1407 = vpop.f32.mrb[0].mxu0
    %v1408 = vadd.f32 %v1231, %v1407
    %v1409 = vpop.f32.mrb[0].mxu0
    %1410 = vmatprep.mubr.f32.mxu0 0.0
    %v1411 = vand.u32 %v134, 4294901760
    %1412 = vmatmul.mubr.f32.gmra.mrb[0].mxu0 %v1411
    %v1413 = vpop.f32.mrb[0].mxu0
    %v1414 = vadd.f32 %v1237, %v1413
    %v1415 = vpop.f32.mrb[0].mxu0
    %1416 = vmatprep.mubr.f32.mxu0 0.0
    %v1417 = vand.u32 %v136, 4294901760
    %1418 = vmatmul.mubr.f32.gmra.mrb[0].mxu0 %v1417
    %v1419 = vpop.f32.mrb[0].mxu0
    %v1420 = vadd.f32 %v1243, %v1419
    %v1421 = vpop.f32.mrb[0].mxu0
    %1422 = vmatprep.mubr.f32.mxu0 0.0
    %v1423 = vand.u32 %v138, 4294901760
    %1424 = vmatmul.mubr.f32.gmra.mrb[0].mxu0 %v1423
    %v1425 = vpop.f32.mrb[0].mxu0
    %v1426 = vadd.f32 %v1249, %v1425
    %v1427 = vpop.f32.mrb[0].mxu0
    %1428 = vmatprep.mubr.f32.mxu0 0.0
    %v1429 = vand.u32 %v140, 4294901760
    %1430 = vmatmul.mubr.f32.gmra.mrb[0].mxu0 %v1429
    %v1431 = vpop.f32.mrb[0].mxu0
    %v1432 = vadd.f32 %v1255, %v1431
    %v1433 = vpop.f32.mrb[0].mxu0
    %1434 = vmatprep.mubr.f32.mxu0 0.0
    %v1435 = vand.u32 %v142, 4294901760
    %1436 = vmatmul.mubr.f32.gmra.mrb[0].mxu0 %v1435
    %v1437 = vpop.f32.mrb[0].mxu0
    %v1438 = vadd.f32 %v1261, %v1437
    %v1439 = vpop.f32.mrb[0].mxu0
    %1440 = vmatprep.mubr.f32.mxu0 0.0
    %v1441 = vand.u32 %v144, 4294901760
    %1442 = vmatmul.mubr.f32.gmra.mrb[0].mxu0 %v1441
    %v1443 = vpop.f32.mrb[0].mxu0
    %v1444 = vadd.f32 %v1267, %v1443
    %v1445 = vpop.f32.mrb[0].mxu0
    %1446 = vdwg.mxu0
    %v1447 = vmul.f32 %v1354, 1.442695
    %v1448 = vpow.pop %v1447
    %v1449 = vmul.f32 %v1360, 1.442695
    %v1450 = vpow.pop %v1449
    %v1451 = vmul.f32 %v1366, 1.442695
    %v1452 = vpow.pop %v1451
    %v1453 = vmul.f32 %v1372, 1.442695
    %v1454 = vpow.pop %v1453
    %v1455 = vmul.f32 %v1378, 1.442695
    %v1456 = vpow.pop %v1455
    %v1457 = vmul.f32 %v1384, 1.442695
    %v1458 = vpow.pop %v1457
    %v1459 = vmul.f32 %v1390, 1.442695
    %v1460 = vpow.pop %v1459
    %v1461 = vmul.f32 %v1396, 1.442695
    %v1462 = vpow.pop %v1461
    %v1463 = vmul.f32 %v1402, 1.442695
    %v1464 = vpow.pop %v1463
    %v1465 = vmul.f32 %v1408, 1.442695
    %v1466 = vpow.pop %v1465
    %v1467 = vmul.f32 %v1414, 1.442695
    %v1468 = vpow.pop %v1467
    %v1469 = vmul.f32 %v1420, 1.442695
    %v1470 = vpow.pop %v1469
    %v1471 = vmul.f32 %v1426, 1.442695
    %v1472 = vpow.pop %v1471
    %v1473 = vmul.f32 %v1432, 1.442695
    %v1474 = vpow.pop %v1473
    %v1475 = vmul.f32 %v1438, 1.442695
    %v1476 = vpow.pop %v1475
    %v1477 = vmul.f32 %v1444, 1.442695
    %v1478 = vpow.pop %v1477
    %v1479 = vld [vmem:[%s1] sm:$0x1]
    %v1481 = vlaneseq
    %v1482 = vshrl.u32 %v1481, 7
    %v1483 = vsub.s32 0, %v1482
    %v1484 = vrot.slane %v1479, %v1483
    %v1486 = vmul.f32 %v81, %v1484
    %v1487 = vmul.f32 %v82, %v1484
    %v1488 = vmul.f32 %v83, %v1484
    %v1489 = vmul.f32 %v84, %v1484
    %v1490 = vmul.f32 %v85, %v1484
    %v1491 = vmul.f32 %v86, %v1484
    %v1492 = vmul.f32 %v87, %v1484
    %v1493 = vmul.f32 %v88, %v1484
    %v1494 = vmul.f32 %v89, %v1484
    %v1495 = vmul.f32 %v90, %v1484
    %v1496 = vmul.f32 %v91, %v1484
    %v1497 = vmul.f32 %v92, %v1484
    %v1498 = vmul.f32 %v93, %v1484
    %v1499 = vmul.f32 %v94, %v1484
    %v1500 = vmul.f32 %v95, %v1484
    %v1501 = vmul.f32 %v96, %v1484
    %v1502 = vld [vmem:[%s2] sm:$0x1]
    %v1504 = vlaneseq
    %v1505 = vshrl.u32 %v1504, 7
    %v1506 = vsub.s32 0, %v1505
    %v1507 = vrot.slane %v1502, %v1506
    %v1509 = vadd.f32 %v1486, %v1507
    %v1510 = vadd.f32 %v1487, %v1507
    %v1511 = vadd.f32 %v1488, %v1507
    %v1512 = vadd.f32 %v1489, %v1507
    %v1513 = vadd.f32 %v1490, %v1507
    %v1514 = vadd.f32 %v1491, %v1507
    %v1515 = vadd.f32 %v1492, %v1507
    %v1516 = vadd.f32 %v1493, %v1507
    %v1517 = vadd.f32 %v1494, %v1507
    %v1518 = vadd.f32 %v1495, %v1507
    %v1519 = vadd.f32 %v1496, %v1507
    %v1520 = vadd.f32 %v1497, %v1507
    %v1521 = vadd.f32 %v1498, %v1507
    %v1522 = vadd.f32 %v1499, %v1507
    %v1523 = vadd.f32 %v1500, %v1507
    %v1524 = vadd.f32 %v1501, %v1507
    %v1525 = vmul.f32 %v1448, %v1509
    %v1526 = vmul.f32 %v1450, %v1510
    %v1527 = vmul.f32 %v1452, %v1511
    %v1528 = vmul.f32 %v1454, %v1512
    %v1529 = vmul.f32 %v1456, %v1513
    %v1530 = vmul.f32 %v1458, %v1514
    %v1531 = vmul.f32 %v1460, %v1515
    %v1532 = vmul.f32 %v1462, %v1516
    %v1533 = vmul.f32 %v1464, %v1517
    %v1534 = vmul.f32 %v1466, %v1518
    %v1535 = vmul.f32 %v1468, %v1519
    %v1536 = vmul.f32 %v1470, %v1520
    %v1537 = vmul.f32 %v1472, %v1521
    %v1538 = vmul.f32 %v1474, %v1522
    %v1539 = vmul.f32 %v1476, %v1523
    %v1540 = vmul.f32 %v1478, %v1524
    %v1541 = vld [vmem:[%s3] sm:$0xff]
    %1542 = vmatprep.subr.mxu0 0.0
    %v1543 = vand.u32 %v1525, 4294901760
    %1544 = vmatpush1.xpose.msra.mxu0 %v1543
    %1545 = vmatprep.subr.mxu0 0.0
    %v1546 = vand.u32 %v1526, 4294901760
    %1547 = vmatpush1.xpose.msra.mxu0 %v1546
    %1548 = vmatprep.subr.mxu0 0.0
    %v1549 = vand.u32 %v1527, 4294901760
    %1550 = vmatpush1.xpose.msra.mxu0 %v1549
    %1551 = vmatprep.subr.mxu0 0.0
    %v1552 = vand.u32 %v1528, 4294901760
    %1553 = vmatpush1.xpose.msra.mxu0 %v1552
    %1554 = vmatprep.subr.mxu0 0.0
    %v1555 = vand.u32 %v1529, 4294901760
    %1556 = vmatpush1.xpose.msra.mxu0 %v1555
    %1557 = vmatprep.subr.mxu0 0.0
    %v1558 = vand.u32 %v1530, 4294901760
    %1559 = vmatpush1.xpose.msra.mxu0 %v1558
    %1560 = vmatprep.subr.mxu0 0.0
    %v1561 = vand.u32 %v1531, 4294901760
    %1562 = vmatpush1.xpose.msra.mxu0 %v1561
    %1563 = vmatprep.subr.mxu0 0.0
    %v1564 = vand.u32 %v1532, 4294901760
    %1565 = vmatpush1.xpose.msra.mxu0 %v1564
    %1566 = vmatprep.subr.mxu0 0.0
    %v1567 = vand.u32 %v1533, 4294901760
    %1568 = vmatpush1.xpose.msra.mxu0 %v1567
    %1569 = vmatprep.subr.mxu0 0.0
    %v1570 = vand.u32 %v1534, 4294901760
    %1571 = vmatpush1.xpose.msra.mxu0 %v1570
    %1572 = vmatprep.subr.mxu0 0.0
    %v1573 = vand.u32 %v1535, 4294901760
    %1574 = vmatpush1.xpose.msra.mxu0 %v1573
    %1575 = vmatprep.subr.mxu0 0.0
    %v1576 = vand.u32 %v1536, 4294901760
    %1577 = vmatpush1.xpose.msra.mxu0 %v1576
    %1578 = vmatprep.subr.mxu0 0.0
    %v1579 = vand.u32 %v1537, 4294901760
    %1580 = vmatpush1.xpose.msra.mxu0 %v1579
    %1581 = vmatprep.subr.mxu0 0.0
    %v1582 = vand.u32 %v1538, 4294901760
    %1583 = vmatpush1.xpose.msra.mxu0 %v1582
    %1584 = vmatprep.subr.mxu0 0.0
    %v1585 = vand.u32 %v1539, 4294901760
    %1586 = vmatpush1.xpose.msra.mxu0 %v1585
    %1587 = vmatprep.subr.mxu0 0.0
    %v1588 = vand.u32 %v1540, 4294901760
    %1589 = vmatpush1.xpose.msra.mxu0 %v1588
    %1590 = vmatprep.subr.mxu0 0.0
    %1591 = vmatpush1.xpose.msra.mxu0 0.0
    %1592 = vmatprep.subr.mxu0 0.0
    %1593 = vmatpush1.xpose.msra.mxu0 0.0
    %1594 = vmatprep.subr.mxu0 0.0
    %1595 = vmatpush1.xpose.msra.mxu0 0.0
    %1596 = vmatprep.subr.mxu0 0.0
    %1597 = vmatpush1.xpose.msra.mxu0 0.0
    %1598 = vmatprep.subr.mxu0 0.0
    %1599 = vmatpush1.xpose.msra.mxu0 0.0
    %1600 = vmatprep.subr.mxu0 0.0
    %1601 = vmatpush1.xpose.msra.mxu0 0.0
    %1602 = vmatprep.subr.mxu0 0.0
    %1603 = vmatpush1.xpose.msra.mxu0 0.0
    %1604 = vmatprep.subr.mxu0 0.0
    %1605 = vmatpush1.xpose.msra.mxu0 0.0
    %1606 = vmatprep.subr.mxu0 0.0
    %1607 = vmatpush1.xpose.msra.mxu0 0.0
    %1608 = vmatprep.subr.mxu0 0.0
    %1609 = vmatpush1.xpose.msra.mxu0 0.0
    %1610 = vmatprep.subr.mxu0 0.0
    %1611 = vmatpush1.xpose.msra.mxu0 0.0
    %1612 = vmatprep.subr.mxu0 0.0
    %1613 = vmatpush1.xpose.msra.mxu0 0.0
    %1614 = vmatprep.subr.mxu0 0.0
    %1615 = vmatpush1.xpose.msra.mxu0 0.0
    %1616 = vmatprep.subr.mxu0 0.0
    %1617 = vmatpush1.xpose.msra.mxu0 0.0
    %1618 = vmatprep.subr.mxu0 0.0
    %1619 = vmatpush1.xpose.msra.mxu0 0.0
    %1620 = vmatprep.subr.mxu0 0.0
    %1621 = vmatpush1.xpose.msra.mxu0 0.0
    %1622 = vmatprep.mubr.f32.mxu0 0.0
    %v1623 = vand.u32 %v1541, 4294901760
    %v1624 = vsub.f32 %v1541, %v1623
    %v1625 = vand.u32 %v1624, 4294901760
    %v1626 = vsub.f32 %v1624, %v1625
    %v1627 = vand.u32 %v1626, 4294901760
    %1628 = vmatmul.mubr.f32.gmra.mrb[0].mxu0 %v1627
    %v1629 = vpop.f32.mrb[0].mxu0
    %v1630 = vadd.f32 0.0, %v1629
    %v1631 = vpop.f32.mrb[0].mxu0
    %1632 = vdwg.mxu0
    %1633 = vmatprep.subr.mxu0 0.0
    %v1634 = vand.u32 %v1525, 4294901760
    %v1635 = vsub.f32 %v1525, %v1634
    %v1636 = vand.u32 %v1635, 4294901760
    %v1637 = vsub.f32 %v1635, %v1636
    %v1638 = vand.u32 %v1637, 4294901760
    %1639 = vmatpush1.xpose.msra.mxu0 %v1638
    %1640 = vmatprep.subr.mxu0 0.0
    %v1641 = vand.u32 %v1526, 4294901760
    %v1642 = vsub.f32 %v1526, %v1641
    %v1643 = vand.u32 %v1642, 4294901760
    %v1644 = vsub.f32 %v1642, %v1643
    %v1645 = vand.u32 %v1644, 4294901760
    %1646 = vmatpush1.xpose.msra.mxu0 %v1645
    %1647 = vmatprep.subr.mxu0 0.0
    %v1648 = vand.u32 %v1527, 4294901760
    %v1649 = vsub.f32 %v1527, %v1648
    %v1650 = vand.u32 %v1649, 4294901760
    %v1651 = vsub.f32 %v1649, %v1650
    %v1652 = vand.u32 %v1651, 4294901760
    %1653 = vmatpush1.xpose.msra.mxu0 %v1652
    %1654 = vmatprep.subr.mxu0 0.0
    %v1655 = vand.u32 %v1528, 4294901760
    %v1656 = vsub.f32 %v1528, %v1655
    %v1657 = vand.u32 %v1656, 4294901760
    %v1658 = vsub.f32 %v1656, %v1657
    %v1659 = vand.u32 %v1658, 4294901760
    %1660 = vmatpush1.xpose.msra.mxu0 %v1659
    %1661 = vmatprep.subr.mxu0 0.0
    %v1662 = vand.u32 %v1529, 4294901760
    %v1663 = vsub.f32 %v1529, %v1662
    %v1664 = vand.u32 %v1663, 4294901760
    %v1665 = vsub.f32 %v1663, %v1664
    %v1666 = vand.u32 %v1665, 4294901760
    %1667 = vmatpush1.xpose.msra.mxu0 %v1666
    %1668 = vmatprep.subr.mxu0 0.0
    %v1669 = vand.u32 %v1530, 4294901760
    %v1670 = vsub.f32 %v1530, %v1669
    %v1671 = vand.u32 %v1670, 4294901760
    %v1672 = vsub.f32 %v1670, %v1671
    %v1673 = vand.u32 %v1672, 4294901760
    %1674 = vmatpush1.xpose.msra.mxu0 %v1673
    %1675 = vmatprep.subr.mxu0 0.0
    %v1676 = vand.u32 %v1531, 4294901760
    %v1677 = vsub.f32 %v1531, %v1676
    %v1678 = vand.u32 %v1677, 4294901760
    %v1679 = vsub.f32 %v1677, %v1678
    %v1680 = vand.u32 %v1679, 4294901760
    %1681 = vmatpush1.xpose.msra.mxu0 %v1680
    %1682 = vmatprep.subr.mxu0 0.0
    %v1683 = vand.u32 %v1532, 4294901760
    %v1684 = vsub.f32 %v1532, %v1683
    %v1685 = vand.u32 %v1684, 4294901760
    %v1686 = vsub.f32 %v1684, %v1685
    %v1687 = vand.u32 %v1686, 4294901760
    %1688 = vmatpush1.xpose.msra.mxu0 %v1687
    %1689 = vmatprep.subr.mxu0 0.0
    %v1690 = vand.u32 %v1533, 4294901760
    %v1691 = vsub.f32 %v1533, %v1690
    %v1692 = vand.u32 %v1691, 4294901760
    %v1693 = vsub.f32 %v1691, %v1692
    %v1694 = vand.u32 %v1693, 4294901760
    %1695 = vmatpush1.xpose.msra.mxu0 %v1694
    %1696 = vmatprep.subr.mxu0 0.0
    %v1697 = vand.u32 %v1534, 4294901760
    %v1698 = vsub.f32 %v1534, %v1697
    %v1699 = vand.u32 %v1698, 4294901760
    %v1700 = vsub.f32 %v1698, %v1699
    %v1701 = vand.u32 %v1700, 4294901760
    %1702 = vmatpush1.xpose.msra.mxu0 %v1701
    %1703 = vmatprep.subr.mxu0 0.0
    %v1704 = vand.u32 %v1535, 4294901760
    %v1705 = vsub.f32 %v1535, %v1704
    %v1706 = vand.u32 %v1705, 4294901760
    %v1707 = vsub.f32 %v1705, %v1706
    %v1708 = vand.u32 %v1707, 4294901760
    %1709 = vmatpush1.xpose.msra.mxu0 %v1708
    %1710 = vmatprep.subr.mxu0 0.0
    %v1711 = vand.u32 %v1536, 4294901760
    %v1712 = vsub.f32 %v1536, %v1711
    %v1713 = vand.u32 %v1712, 4294901760
    %v1714 = vsub.f32 %v1712, %v1713
    %v1715 = vand.u32 %v1714, 4294901760
    %1716 = vmatpush1.xpose.msra.mxu0 %v1715
    %1717 = vmatprep.subr.mxu0 0.0
    %v1718 = vand.u32 %v1537, 4294901760
    %v1719 = vsub.f32 %v1537, %v1718
    %v1720 = vand.u32 %v1719, 4294901760
    %v1721 = vsub.f32 %v1719, %v1720
    %v1722 = vand.u32 %v1721, 4294901760
    %1723 = vmatpush1.xpose.msra.mxu0 %v1722
    %1724 = vmatprep.subr.mxu0 0.0
    %v1725 = vand.u32 %v1538, 4294901760
    %v1726 = vsub.f32 %v1538, %v1725
    %v1727 = vand.u32 %v1726, 4294901760
    %v1728 = vsub.f32 %v1726, %v1727
    %v1729 = vand.u32 %v1728, 4294901760
    %1730 = vmatpush1.xpose.msra.mxu0 %v1729
    %1731 = vmatprep.subr.mxu0 0.0
    %v1732 = vand.u32 %v1539, 4294901760
    %v1733 = vsub.f32 %v1539, %v1732
    %v1734 = vand.u32 %v1733, 4294901760
    %v1735 = vsub.f32 %v1733, %v1734
    %v1736 = vand.u32 %v1735, 4294901760
    %1737 = vmatpush1.xpose.msra.mxu0 %v1736
    %1738 = vmatprep.subr.mxu0 0.0
    %v1739 = vand.u32 %v1540, 4294901760
    %v1740 = vsub.f32 %v1540, %v1739
    %v1741 = vand.u32 %v1740, 4294901760
    %v1742 = vsub.f32 %v1740, %v1741
    %v1743 = vand.u32 %v1742, 4294901760
    %1744 = vmatpush1.xpose.msra.mxu0 %v1743
    %1745 = vmatprep.subr.mxu0 0.0
    %1746 = vmatpush1.xpose.msra.mxu0 0.0
    %1747 = vmatprep.subr.mxu0 0.0
    %1748 = vmatpush1.xpose.msra.mxu0 0.0
    %1749 = vmatprep.subr.mxu0 0.0
    %1750 = vmatpush1.xpose.msra.mxu0 0.0
    %1751 = vmatprep.subr.mxu0 0.0
    %1752 = vmatpush1.xpose.msra.mxu0 0.0
    %1753 = vmatprep.subr.mxu0 0.0
    %1754 = vmatpush1.xpose.msra.mxu0 0.0
    %1755 = vmatprep.subr.mxu0 0.0
    %1756 = vmatpush1.xpose.msra.mxu0 0.0
    %1757 = vmatprep.subr.mxu0 0.0
    %1758 = vmatpush1.xpose.msra.mxu0 0.0
    %1759 = vmatprep.subr.mxu0 0.0
    %1760 = vmatpush1.xpose.msra.mxu0 0.0
    %1761 = vmatprep.subr.mxu0 0.0
    %1762 = vmatpush1.xpose.msra.mxu0 0.0
    %1763 = vmatprep.subr.mxu0 0.0
    %1764 = vmatpush1.xpose.msra.mxu0 0.0
    %1765 = vmatprep.subr.mxu0 0.0
    %1766 = vmatpush1.xpose.msra.mxu0 0.0
    %1767 = vmatprep.subr.mxu0 0.0
    %1768 = vmatpush1.xpose.msra.mxu0 0.0
    %1769 = vmatprep.subr.mxu0 0.0
    %1770 = vmatpush1.xpose.msra.mxu0 0.0
    %1771 = vmatprep.subr.mxu0 0.0
    %1772 = vmatpush1.xpose.msra.mxu0 0.0
    %1773 = vmatprep.subr.mxu0 0.0
    %1774 = vmatpush1.xpose.msra.mxu0 0.0
    %1775 = vmatprep.subr.mxu0 0.0
    %1776 = vmatpush1.xpose.msra.mxu0 0.0
    %1777 = vmatprep.mubr.f32.mxu0 0.0
    %v1778 = vand.u32 %v1541, 4294901760
    %1779 = vmatmul.mubr.f32.gmra.mrb[0].mxu0 %v1778
    %v1780 = vpop.f32.mrb[0].mxu0
    %v1781 = vadd.f32 %v1630, %v1780
    %v1782 = vpop.f32.mrb[0].mxu0
    %1783 = vdwg.mxu0
    %1784 = vmatprep.subr.mxu0 0.0
    %v1785 = vand.u32 %v1525, 4294901760
    %v1786 = vsub.f32 %v1525, %v1785
    %1787 = vmatpush1.xpose.msra.mxu0 %v1786
    %1788 = vmatprep.subr.mxu0 0.0
    %v1789 = vand.u32 %v1526, 4294901760
    %v1790 = vsub.f32 %v1526, %v1789
    %1791 = vmatpush1.xpose.msra.mxu0 %v1790
    %1792 = vmatprep.subr.mxu0 0.0
    %v1793 = vand.u32 %v1527, 4294901760
    %v1794 = vsub.f32 %v1527, %v1793
    %1795 = vmatpush1.xpose.msra.mxu0 %v1794
    %1796 = vmatprep.subr.mxu0 0.0
    %v1797 = vand.u32 %v1528, 4294901760
    %v1798 = vsub.f32 %v1528, %v1797
    %1799 = vmatpush1.xpose.msra.mxu0 %v1798
    %1800 = vmatprep.subr.mxu0 0.0
    %v1801 = vand.u32 %v1529, 4294901760
    %v1802 = vsub.f32 %v1529, %v1801
    %1803 = vmatpush1.xpose.msra.mxu0 %v1802
    %1804 = vmatprep.subr.mxu0 0.0
    %v1805 = vand.u32 %v1530, 4294901760
    %v1806 = vsub.f32 %v1530, %v1805
    %1807 = vmatpush1.xpose.msra.mxu0 %v1806
    %1808 = vmatprep.subr.mxu0 0.0
    %v1809 = vand.u32 %v1531, 4294901760
    %v1810 = vsub.f32 %v1531, %v1809
    %1811 = vmatpush1.xpose.msra.mxu0 %v1810
    %1812 = vmatprep.subr.mxu0 0.0
    %v1813 = vand.u32 %v1532, 4294901760
    %v1814 = vsub.f32 %v1532, %v1813
    %1815 = vmatpush1.xpose.msra.mxu0 %v1814
    %1816 = vmatprep.subr.mxu0 0.0
    %v1817 = vand.u32 %v1533, 4294901760
    %v1818 = vsub.f32 %v1533, %v1817
    %1819 = vmatpush1.xpose.msra.mxu0 %v1818
    %1820 = vmatprep.subr.mxu0 0.0
    %v1821 = vand.u32 %v1534, 4294901760
    %v1822 = vsub.f32 %v1534, %v1821
    %1823 = vmatpush1.xpose.msra.mxu0 %v1822
    %1824 = vmatprep.subr.mxu0 0.0
    %v1825 = vand.u32 %v1535, 4294901760
    %v1826 = vsub.f32 %v1535, %v1825
    %1827 = vmatpush1.xpose.msra.mxu0 %v1826
    %1828 = vmatprep.subr.mxu0 0.0
    %v1829 = vand.u32 %v1536, 4294901760
    %v1830 = vsub.f32 %v1536, %v1829
    %1831 = vmatpush1.xpose.msra.mxu0 %v1830
    %1832 = vmatprep.subr.mxu0 0.0
    %v1833 = vand.u32 %v1537, 4294901760
    %v1834 = vsub.f32 %v1537, %v1833
    %1835 = vmatpush1.xpose.msra.mxu0 %v1834
    %1836 = vmatprep.subr.mxu0 0.0
    %v1837 = vand.u32 %v1538, 4294901760
    %v1838 = vsub.f32 %v1538, %v1837
    %1839 = vmatpush1.xpose.msra.mxu0 %v1838
    %1840 = vmatprep.subr.mxu0 0.0
    %v1841 = vand.u32 %v1539, 4294901760
    %v1842 = vsub.f32 %v1539, %v1841
    %1843 = vmatpush1.xpose.msra.mxu0 %v1842
    %1844 = vmatprep.subr.mxu0 0.0
    %v1845 = vand.u32 %v1540, 4294901760
    %v1846 = vsub.f32 %v1540, %v1845
    %1847 = vmatpush1.xpose.msra.mxu0 %v1846
    %1848 = vmatprep.subr.mxu0 0.0
    %1849 = vmatpush1.xpose.msra.mxu0 0.0
    %1850 = vmatprep.subr.mxu0 0.0
    %1851 = vmatpush1.xpose.msra.mxu0 0.0
    %1852 = vmatprep.subr.mxu0 0.0
    %1853 = vmatpush1.xpose.msra.mxu0 0.0
    %1854 = vmatprep.subr.mxu0 0.0
    %1855 = vmatpush1.xpose.msra.mxu0 0.0
    %1856 = vmatprep.subr.mxu0 0.0
    %1857 = vmatpush1.xpose.msra.mxu0 0.0
    %1858 = vmatprep.subr.mxu0 0.0
    %1859 = vmatpush1.xpose.msra.mxu0 0.0
    %1860 = vmatprep.subr.mxu0 0.0
    %1861 = vmatpush1.xpose.msra.mxu0 0.0
    %1862 = vmatprep.subr.mxu0 0.0
    %1863 = vmatpush1.xpose.msra.mxu0 0.0
    %1864 = vmatprep.subr.mxu0 0.0
    %1865 = vmatpush1.xpose.msra.mxu0 0.0
    %1866 = vmatprep.subr.mxu0 0.0
    %1867 = vmatpush1.xpose.msra.mxu0 0.0
    %1868 = vmatprep.subr.mxu0 0.0
    %1869 = vmatpush1.xpose.msra.mxu0 0.0
    %1870 = vmatprep.subr.mxu0 0.0
    %1871 = vmatpush1.xpose.msra.mxu0 0.0
    %1872 = vmatprep.subr.mxu0 0.0
    %1873 = vmatpush1.xpose.msra.mxu0 0.0
    %1874 = vmatprep.subr.mxu0 0.0
    %1875 = vmatpush1.xpose.msra.mxu0 0.0
    %1876 = vmatprep.subr.mxu0 0.0
    %1877 = vmatpush1.xpose.msra.mxu0 0.0
    %1878 = vmatprep.subr.mxu0 0.0
    %1879 = vmatpush1.xpose.msra.mxu0 0.0
    %1880 = vmatprep.mubr.f32.mxu0 0.0
    %v1881 = vand.u32 %v1541, 4294901760
    %v1882 = vsub.f32 %v1541, %v1881
    %1883 = vmatmul.mubr.f32.gmra.mrb[0].mxu0 %v1882
    %v1884 = vpop.f32.mrb[0].mxu0
    %v1885 = vadd.f32 %v1781, %v1884
    %v1886 = vpop.f32.mrb[0].mxu0
    %1887 = vdwg.mxu0
    %1888 = vmatprep.subr.mxu0 0.0
    %v1889 = vand.u32 %v1525, 4294901760
    %1890 = vmatpush1.xpose.msra.mxu0 %v1889
    %1891 = vmatprep.subr.mxu0 0.0
    %v1892 = vand.u32 %v1526, 4294901760
    %1893 = vmatpush1.xpose.msra.mxu0 %v1892
    %1894 = vmatprep.subr.mxu0 0.0
    %v1895 = vand.u32 %v1527, 4294901760
    %1896 = vmatpush1.xpose.msra.mxu0 %v1895
    %1897 = vmatprep.subr.mxu0 0.0
    %v1898 = vand.u32 %v1528, 4294901760
    %1899 = vmatpush1.xpose.msra.mxu0 %v1898
    %1900 = vmatprep.subr.mxu0 0.0
    %v1901 = vand.u32 %v1529, 4294901760
    %1902 = vmatpush1.xpose.msra.mxu0 %v1901
    %1903 = vmatprep.subr.mxu0 0.0
    %v1904 = vand.u32 %v1530, 4294901760
    %1905 = vmatpush1.xpose.msra.mxu0 %v1904
    %1906 = vmatprep.subr.mxu0 0.0
    %v1907 = vand.u32 %v1531, 4294901760
    %1908 = vmatpush1.xpose.msra.mxu0 %v1907
    %1909 = vmatprep.subr.mxu0 0.0
    %v1910 = vand.u32 %v1532, 4294901760
    %1911 = vmatpush1.xpose.msra.mxu0 %v1910
    %1912 = vmatprep.subr.mxu0 0.0
    %v1913 = vand.u32 %v1533, 4294901760
    %1914 = vmatpush1.xpose.msra.mxu0 %v1913
    %1915 = vmatprep.subr.mxu0 0.0
    %v1916 = vand.u32 %v1534, 4294901760
    %1917 = vmatpush1.xpose.msra.mxu0 %v1916
    %1918 = vmatprep.subr.mxu0 0.0
    %v1919 = vand.u32 %v1535, 4294901760
    %1920 = vmatpush1.xpose.msra.mxu0 %v1919
    %1921 = vmatprep.subr.mxu0 0.0
    %v1922 = vand.u32 %v1536, 4294901760
    %1923 = vmatpush1.xpose.msra.mxu0 %v1922
    %1924 = vmatprep.subr.mxu0 0.0
    %v1925 = vand.u32 %v1537, 4294901760
    %1926 = vmatpush1.xpose.msra.mxu0 %v1925
    %1927 = vmatprep.subr.mxu0 0.0
    %v1928 = vand.u32 %v1538, 4294901760
    %1929 = vmatpush1.xpose.msra.mxu0 %v1928
    %1930 = vmatprep.subr.mxu0 0.0
    %v1931 = vand.u32 %v1539, 4294901760
    %1932 = vmatpush1.xpose.msra.mxu0 %v1931
    %1933 = vmatprep.subr.mxu0 0.0
    %v1934 = vand.u32 %v1540, 4294901760
    %1935 = vmatpush1.xpose.msra.mxu0 %v1934
    %1936 = vmatprep.subr.mxu0 0.0
    %1937 = vmatpush1.xpose.msra.mxu0 0.0
    %1938 = vmatprep.subr.mxu0 0.0
    %1939 = vmatpush1.xpose.msra.mxu0 0.0
    %1940 = vmatprep.subr.mxu0 0.0
    %1941 = vmatpush1.xpose.msra.mxu0 0.0
    %1942 = vmatprep.subr.mxu0 0.0
    %1943 = vmatpush1.xpose.msra.mxu0 0.0
    %1944 = vmatprep.subr.mxu0 0.0
    %1945 = vmatpush1.xpose.msra.mxu0 0.0
    %1946 = vmatprep.subr.mxu0 0.0
    %1947 = vmatpush1.xpose.msra.mxu0 0.0
    %1948 = vmatprep.subr.mxu0 0.0
    %1949 = vmatpush1.xpose.msra.mxu0 0.0
    %1950 = vmatprep.subr.mxu0 0.0
    %1951 = vmatpush1.xpose.msra.mxu0 0.0
    %1952 = vmatprep.subr.mxu0 0.0
    %1953 = vmatpush1.xpose.msra.mxu0 0.0
    %1954 = vmatprep.subr.mxu0 0.0
    %1955 = vmatpush1.xpose.msra.mxu0 0.0
    %1956 = vmatprep.subr.mxu0 0.0
    %1957 = vmatpush1.xpose.msra.mxu0 0.0
    %1958 = vmatprep.subr.mxu0 0.0
    %1959 = vmatpush1.xpose.msra.mxu0 0.0
    %1960 = vmatprep.subr.mxu0 0.0
    %1961 = vmatpush1.xpose.msra.mxu0 0.0
    %1962 = vmatprep.subr.mxu0 0.0
    %1963 = vmatpush1.xpose.msra.mxu0 0.0
    %1964 = vmatprep.subr.mxu0 0.0
    %1965 = vmatpush1.xpose.msra.mxu0 0.0
    %1966 = vmatprep.subr.mxu0 0.0
    %1967 = vmatpush1.xpose.msra.mxu0 0.0
    %1968 = vmatprep.mubr.f32.mxu0 0.0
    %v1969 = vand.u32 %v1541, 4294901760
    %v1970 = vsub.f32 %v1541, %v1969
    %v1971 = vand.u32 %v1970, 4294901760
    %1972 = vmatmul.mubr.f32.gmra.mrb[0].mxu0 %v1971
    %v1973 = vpop.f32.mrb[0].mxu0
    %v1974 = vadd.f32 %v1885, %v1973
    %v1975 = vpop.f32.mrb[0].mxu0
    %1976 = vdwg.mxu0
    %1977 = vmatprep.subr.mxu0 0.0
    %v1978 = vand.u32 %v1525, 4294901760
    %v1979 = vsub.f32 %v1525, %v1978
    %v1980 = vand.u32 %v1979, 4294901760
    %1981 = vmatpush1.xpose.msra.mxu0 %v1980
    %1982 = vmatprep.subr.mxu0 0.0
    %v1983 = vand.u32 %v1526, 4294901760
    %v1984 = vsub.f32 %v1526, %v1983
    %v1985 = vand.u32 %v1984, 4294901760
    %1986 = vmatpush1.xpose.msra.mxu0 %v1985
    %1987 = vmatprep.subr.mxu0 0.0
    %v1988 = vand.u32 %v1527, 4294901760
    %v1989 = vsub.f32 %v1527, %v1988
    %v1990 = vand.u32 %v1989, 4294901760
    %1991 = vmatpush1.xpose.msra.mxu0 %v1990
    %1992 = vmatprep.subr.mxu0 0.0
    %v1993 = vand.u32 %v1528, 4294901760
    %v1994 = vsub.f32 %v1528, %v1993
    %v1995 = vand.u32 %v1994, 4294901760
    %1996 = vmatpush1.xpose.msra.mxu0 %v1995
    %1997 = vmatprep.subr.mxu0 0.0
    %v1998 = vand.u32 %v1529, 4294901760
    %v1999 = vsub.f32 %v1529, %v1998
    %v2000 = vand.u32 %v1999, 4294901760
    %2001 = vmatpush1.xpose.msra.mxu0 %v2000
    %2002 = vmatprep.subr.mxu0 0.0
    %v2003 = vand.u32 %v1530, 4294901760
    %v2004 = vsub.f32 %v1530, %v2003
    %v2005 = vand.u32 %v2004, 4294901760
    %2006 = vmatpush1.xpose.msra.mxu0 %v2005
    %2007 = vmatprep.subr.mxu0 0.0
    %v2008 = vand.u32 %v1531, 4294901760
    %v2009 = vsub.f32 %v1531, %v2008
    %v2010 = vand.u32 %v2009, 4294901760
    %2011 = vmatpush1.xpose.msra.mxu0 %v2010
    %2012 = vmatprep.subr.mxu0 0.0
    %v2013 = vand.u32 %v1532, 4294901760
    %v2014 = vsub.f32 %v1532, %v2013
    %v2015 = vand.u32 %v2014, 4294901760
    %2016 = vmatpush1.xpose.msra.mxu0 %v2015
    %2017 = vmatprep.subr.mxu0 0.0
    %v2018 = vand.u32 %v1533, 4294901760
    %v2019 = vsub.f32 %v1533, %v2018
    %v2020 = vand.u32 %v2019, 4294901760
    %2021 = vmatpush1.xpose.msra.mxu0 %v2020
    %2022 = vmatprep.subr.mxu0 0.0
    %v2023 = vand.u32 %v1534, 4294901760
    %v2024 = vsub.f32 %v1534, %v2023
    %v2025 = vand.u32 %v2024, 4294901760
    %2026 = vmatpush1.xpose.msra.mxu0 %v2025
    %2027 = vmatprep.subr.mxu0 0.0
    %v2028 = vand.u32 %v1535, 4294901760
    %v2029 = vsub.f32 %v1535, %v2028
    %v2030 = vand.u32 %v2029, 4294901760
    %2031 = vmatpush1.xpose.msra.mxu0 %v2030
    %2032 = vmatprep.subr.mxu0 0.0
    %v2033 = vand.u32 %v1536, 4294901760
    %v2034 = vsub.f32 %v1536, %v2033
    %v2035 = vand.u32 %v2034, 4294901760
    %2036 = vmatpush1.xpose.msra.mxu0 %v2035
    %2037 = vmatprep.subr.mxu0 0.0
    %v2038 = vand.u32 %v1537, 4294901760
    %v2039 = vsub.f32 %v1537, %v2038
    %v2040 = vand.u32 %v2039, 4294901760
    %2041 = vmatpush1.xpose.msra.mxu0 %v2040
    %2042 = vmatprep.subr.mxu0 0.0
    %v2043 = vand.u32 %v1538, 4294901760
    %v2044 = vsub.f32 %v1538, %v2043
    %v2045 = vand.u32 %v2044, 4294901760
    %2046 = vmatpush1.xpose.msra.mxu0 %v2045
    %2047 = vmatprep.subr.mxu0 0.0
    %v2048 = vand.u32 %v1539, 4294901760
    %v2049 = vsub.f32 %v1539, %v2048
    %v2050 = vand.u32 %v2049, 4294901760
    %2051 = vmatpush1.xpose.msra.mxu0 %v2050
    %2052 = vmatprep.subr.mxu0 0.0
    %v2053 = vand.u32 %v1540, 4294901760
    %v2054 = vsub.f32 %v1540, %v2053
    %v2055 = vand.u32 %v2054, 4294901760
    %2056 = vmatpush1.xpose.msra.mxu0 %v2055
    %2057 = vmatprep.subr.mxu0 0.0
    %2058 = vmatpush1.xpose.msra.mxu0 0.0
    %2059 = vmatprep.subr.mxu0 0.0
    %2060 = vmatpush1.xpose.msra.mxu0 0.0
    %2061 = vmatprep.subr.mxu0 0.0
    %2062 = vmatpush1.xpose.msra.mxu0 0.0
    %2063 = vmatprep.subr.mxu0 0.0
    %2064 = vmatpush1.xpose.msra.mxu0 0.0
    %2065 = vmatprep.subr.mxu0 0.0
    %2066 = vmatpush1.xpose.msra.mxu0 0.0
    %2067 = vmatprep.subr.mxu0 0.0
    %2068 = vmatpush1.xpose.msra.mxu0 0.0
    %2069 = vmatprep.subr.mxu0 0.0
    %2070 = vmatpush1.xpose.msra.mxu0 0.0
    %2071 = vmatprep.subr.mxu0 0.0
    %2072 = vmatpush1.xpose.msra.mxu0 0.0
    %2073 = vmatprep.subr.mxu0 0.0
    %2074 = vmatpush1.xpose.msra.mxu0 0.0
    %2075 = vmatprep.subr.mxu0 0.0
    %2076 = vmatpush1.xpose.msra.mxu0 0.0
    %2077 = vmatprep.subr.mxu0 0.0
    %2078 = vmatpush1.xpose.msra.mxu0 0.0
    %2079 = vmatprep.subr.mxu0 0.0
    %2080 = vmatpush1.xpose.msra.mxu0 0.0
    %2081 = vmatprep.subr.mxu0 0.0
    %2082 = vmatpush1.xpose.msra.mxu0 0.0
    %2083 = vmatprep.subr.mxu0 0.0
    %2084 = vmatpush1.xpose.msra.mxu0 0.0
    %2085 = vmatprep.subr.mxu0 0.0
    %2086 = vmatpush1.xpose.msra.mxu0 0.0
    %2087 = vmatprep.subr.mxu0 0.0
    %2088 = vmatpush1.xpose.msra.mxu0 0.0
    %2089 = vmatprep.mubr.f32.mxu0 0.0
    %v2090 = vand.u32 %v1541, 4294901760
    %2091 = vmatmul.mubr.f32.gmra.mrb[0].mxu0 %v2090
    %v2092 = vpop.f32.mrb[0].mxu0
    %v2093 = vadd.f32 %v1974, %v2092
    %v2094 = vpop.f32.mrb[0].mxu0
    %2095 = vdwg.mxu0
    %2096 = vmatprep.subr.mxu0 0.0
    %v2097 = vand.u32 %v1525, 4294901760
    %2098 = vmatpush1.xpose.msra.mxu0 %v2097
    %2099 = vmatprep.subr.mxu0 0.0
    %v2100 = vand.u32 %v1526, 4294901760
    %2101 = vmatpush1.xpose.msra.mxu0 %v2100
    %2102 = vmatprep.subr.mxu0 0.0
    %v2103 = vand.u32 %v1527, 4294901760
    %2104 = vmatpush1.xpose.msra.mxu0 %v2103
    %2105 = vmatprep.subr.mxu0 0.0
    %v2106 = vand.u32 %v1528, 4294901760
    %2107 = vmatpush1.xpose.msra.mxu0 %v2106
    %2108 = vmatprep.subr.mxu0 0.0
    %v2109 = vand.u32 %v1529, 4294901760
    %2110 = vmatpush1.xpose.msra.mxu0 %v2109
    %2111 = vmatprep.subr.mxu0 0.0
    %v2112 = vand.u32 %v1530, 4294901760
    %2113 = vmatpush1.xpose.msra.mxu0 %v2112
    %2114 = vmatprep.subr.mxu0 0.0
    %v2115 = vand.u32 %v1531, 4294901760
    %2116 = vmatpush1.xpose.msra.mxu0 %v2115
    %2117 = vmatprep.subr.mxu0 0.0
    %v2118 = vand.u32 %v1532, 4294901760
    %2119 = vmatpush1.xpose.msra.mxu0 %v2118
    %2120 = vmatprep.subr.mxu0 0.0
    %v2121 = vand.u32 %v1533, 4294901760
    %2122 = vmatpush1.xpose.msra.mxu0 %v2121
    %2123 = vmatprep.subr.mxu0 0.0
    %v2124 = vand.u32 %v1534, 4294901760
    %2125 = vmatpush1.xpose.msra.mxu0 %v2124
    %2126 = vmatprep.subr.mxu0 0.0
    %v2127 = vand.u32 %v1535, 4294901760
    %2128 = vmatpush1.xpose.msra.mxu0 %v2127
    %2129 = vmatprep.subr.mxu0 0.0
    %v2130 = vand.u32 %v1536, 4294901760
    %2131 = vmatpush1.xpose.msra.mxu0 %v2130
    %2132 = vmatprep.subr.mxu0 0.0
    %v2133 = vand.u32 %v1537, 4294901760
    %2134 = vmatpush1.xpose.msra.mxu0 %v2133
    %2135 = vmatprep.subr.mxu0 0.0
    %v2136 = vand.u32 %v1538, 4294901760
    %2137 = vmatpush1.xpose.msra.mxu0 %v2136
    %2138 = vmatprep.subr.mxu0 0.0
    %v2139 = vand.u32 %v1539, 4294901760
    %2140 = vmatpush1.xpose.msra.mxu0 %v2139
    %2141 = vmatprep.subr.mxu0 0.0
    %v2142 = vand.u32 %v1540, 4294901760
    %2143 = vmatpush1.xpose.msra.mxu0 %v2142
    %2144 = vmatprep.subr.mxu0 0.0
    %2145 = vmatpush1.xpose.msra.mxu0 0.0
    %2146 = vmatprep.subr.mxu0 0.0
    %2147 = vmatpush1.xpose.msra.mxu0 0.0
    %2148 = vmatprep.subr.mxu0 0.0
    %2149 = vmatpush1.xpose.msra.mxu0 0.0
    %2150 = vmatprep.subr.mxu0 0.0
    %2151 = vmatpush1.xpose.msra.mxu0 0.0
    %2152 = vmatprep.subr.mxu0 0.0
    %2153 = vmatpush1.xpose.msra.mxu0 0.0
    %2154 = vmatprep.subr.mxu0 0.0
    %2155 = vmatpush1.xpose.msra.mxu0 0.0
    %2156 = vmatprep.subr.mxu0 0.0
    %2157 = vmatpush1.xpose.msra.mxu0 0.0
    %2158 = vmatprep.subr.mxu0 0.0
    %2159 = vmatpush1.xpose.msra.mxu0 0.0
    %2160 = vmatprep.subr.mxu0 0.0
    %2161 = vmatpush1.xpose.msra.mxu0 0.0
    %2162 = vmatprep.subr.mxu0 0.0
    %2163 = vmatpush1.xpose.msra.mxu0 0.0
    %2164 = vmatprep.subr.mxu0 0.0
    %2165 = vmatpush1.xpose.msra.mxu0 0.0
    %2166 = vmatprep.subr.mxu0 0.0
    %2167 = vmatpush1.xpose.msra.mxu0 0.0
    %2168 = vmatprep.subr.mxu0 0.0
    %2169 = vmatpush1.xpose.msra.mxu0 0.0
    %2170 = vmatprep.subr.mxu0 0.0
    %2171 = vmatpush1.xpose.msra.mxu0 0.0
    %2172 = vmatprep.subr.mxu0 0.0
    %2173 = vmatpush1.xpose.msra.mxu0 0.0
    %2174 = vmatprep.subr.mxu0 0.0
    %2175 = vmatpush1.xpose.msra.mxu0 0.0
    %2176 = vmatprep.mubr.f32.mxu0 0.0
    %v2177 = vand.u32 %v1541, 4294901760
    %2178 = vmatmul.mubr.f32.gmra.mrb[0].mxu0 %v2177
    %v2179 = vpop.f32.mrb[0].mxu0
    %v2180 = vadd.f32 %v2093, %v2179
    %v2181 = vpop.f32.mrb[0].mxu0
    %2182 = vdwg.mxu0
    %2183 = vst [vmem:[#allocation7] sm:$0xff] %v2180
    // Predicated region
    $region30: #{tpu_custom_call.1} parent=1 // pred_check
      _
    $region31: #{tpu_custom_call.1} parent=1 // pred_check_branch
      %2185 = sbr.rel (0) target = $region33
    $region32: #{tpu_custom_call.1} parent=1 // pred_region
      %s2187 = ssub.s32 128, 128
      %2188 = vsyncadd [#allocation4], %s2187
      %s2190 = sshll.u32 [#allocation7], 4
      %s2191 = int_to_ptr.vmem [resolvable:$true] %s2190
      %2193 = dma.vmem_to_hbm [thread:$0]  %s2191, 128, %s5, [#allocation4]
    $region33: #{tpu_custom_call.1} parent=1 // pred_fallthru
      _
    // Predicated region
    $region34: #{tpu_custom_call.1} parent=1 // pred_check
      _
    $region35: #{tpu_custom_call.1} parent=1 // pred_check_branch
      %2195 = sbr.rel (0) target = $region37
    $region36: #{tpu_custom_call.1} parent=1 // pred_region
      %2196 = dma.done [#allocation4], 128
    $region37: #{tpu_custom_call.1} parent=1 // pred_fallthru
      _
    %2197 = vsyncpa [#allocation3], 1
    %2198 = vsyncpa [#allocation6], 1
    %2199 = vsyncpa [#allocation4], 1

</llo_original>
